<compile_context>
chip_gen: v6e
topology: v6e:2x2x1
jax: 0.10.0
libtpu: 0.0.40
codegen_flags: <defaults>
</compile_context>

<pallas_src>
import functools

import numpy as np
import jax
import jax.numpy as jnp
from jax.experimental import pallas as pl
from jax.experimental.pallas import tpu as pltpu


def _make_pool_kernel(c, tm):
    """Builds the scatter-max / scatter-sum kernel closed over (C, tm)."""
    k = c + 4  # packed slab width: C feature channels + 3 weighted xyz + count

    def kernel(blk_start_ref, num_blk_ref, idx_ref, data_ref, out_ref):
        # blk_start_ref, num_blk_ref : scalar-prefetched (G,) int32 in SMEM
        # idx_ref  : (tn, 1)  int32   coarse index per (sorted) fine voxel
        # data_ref : (tn, C+4) f32    [feat | points*counts | counts]
        # out_ref  : (C+4, tm) f32    transposed, lane-dense output slab
        i = pl.program_id(0)              # coarse-voxel tile (parallel)
        j = pl.program_id(1)              # fine-block step   (reduction)

        @pl.when(j == 0)
        def _init():
            out_ref[...] = jnp.concatenate(
                [jnp.full((c, tm), -jnp.inf, jnp.float32),
                 jnp.zeros((4, tm), jnp.float32)], axis=0)

        # Only accumulate for fine blocks that actually belong to this coarse
        # tile; extra grid steps (j >= num_blk[i]) are skipped entirely.
        @pl.when(j < num_blk_ref[i])
        def _accumulate():
            idx = idx_ref[...]                                        # (tn, 1)
            m_ids = i * tm + jax.lax.broadcasted_iota(jnp.int32, (1, tm), 1)
            mask = idx == m_ids                                       # (tn, tm)
            slab = data_ref[...]                                      # (tn, C+4)
            cur = out_ref[...]                                        # (C+4, tm)

            # Count-weighted centroid + count sums on the MXU:
            #   (4, tm) = slab[:, C:]^T(contract tn) @ mask
            sums = jax.lax.dot_general(
                slab[:, c:], mask.astype(jnp.float32),
                (((0,), (0,)), ((), ())),
                precision=jax.lax.Precision.HIGHEST,
                preferred_element_type=jnp.float32)                   # (4, tm)

            # Channel-wise feature max on the VPU/XLU; live intermediate is
            # capped at (tn, tm) per channel (C is small).
            parts = [jnp.max(jnp.where(mask, slab[:, ch:ch + 1], -jnp.inf),
                             axis=0, keepdims=True) for ch in range(c)]
            new_max = jnp.maximum(cur[:c, :], jnp.concatenate(parts, axis=0))

            out_ref[...] = jnp.concatenate([new_max, cur[c:, :] + sums], axis=0)

        @pl.when(j == pl.num_programs(1) - 1)
        def _finalize():
            cur = out_ref[...]
            cnt = cur[k - 1:k, :]                                     # (1, tm)
            denom = jnp.maximum(cnt, 1.0)
            # Rows for padded coarse voxels stay -inf / 0; the wrapper slices
            # them off, so no extra masking is needed here.
            out_ref[...] = jnp.concatenate(
                [cur[:c, :], cur[c:c + 3, :] / denom, cnt], axis=0)

    return kernel


def _pooled_reductions(blk_start, num_blk, idx_col, slab, *, c, tm, tn,
                       num_coarse_tiles, max_blocks, m_pad, num_fine_blocks):
    kernel = _make_pool_kernel(c, tm)
    last_blk = num_fine_blocks - 1

    def fine_map(i, j, bs_ref, nb_ref):
        # Clamp so skipped steps (j >= num_blk[i]) still DMA a valid block;
        # the pl.when guard in the kernel prevents any double accumulation.
        return (jnp.minimum(bs_ref[i] + j, last_blk), 0)

    return pl.pallas_call(
        kernel,
        out_shape=jax.ShapeDtypeStruct((c + 4, m_pad), jnp.float32),
        grid_spec=pltpu.PrefetchScalarGridSpec(
            num_scalar_prefetch=2,
            grid=(num_coarse_tiles, max_blocks),
            in_specs=[
                pl.BlockSpec((tn, 1), fine_map),       # coarse index per fine voxel
                pl.BlockSpec((tn, c + 4), fine_map),   # packed [feat|w*pts|cnt]
            ],
            out_specs=pl.BlockSpec((c + 4, tm), lambda i, j, bs, nb: (0, i)),
        ),
        compiler_params=pltpu.CompilerParams(
            dimension_semantics=("parallel", "arbitrary")),
    )(blk_start, num_blk, idx_col, slab)


def max_pool_with_points(coords, feats, points, counts, *, tm=128, tn=256):
    """MinkowskiMaxPooling(k=2, s=2) + stride_centroids.

    coords: (N, 4) int32 [batch, x, y, z]  unique fine-voxel coordinates
    feats : (N, C) float32
    points: (N, 3) float32  per-voxel point centroid
    counts: (N,)   int32    number of points per voxel
    returns (down_coords (M,4) int32, down_feats (M,C), down_points (M,3),
             down_counts (M,) int32)

    tm must be a multiple of 128 (coarse voxels sit on the lane axis);
    tn must be a multiple of 8.
    """
    # TODO(synk): MinkowskiEngine's coordinate manager (unique coarse-coord
    # hashing / stride_map) produces data-dependent output sizes; done host-side.
    c_np = np.asarray(coords)
    coarse = np.concatenate(
        [c_np[:, :1], np.floor_divide(c_np[:, 1:], 2) * 2], axis=1)
    uniq, inv = np.unique(coarse, axis=0, return_inverse=True)
    inv = np.asarray(inv).reshape(-1).astype(np.int32)
    m = int(uniq.shape[0])
    n, c = feats.shape

    # Sort fine voxels by coarse index so each coarse tile maps to a
    # contiguous fine range (enables data-dependent fine-block indexing).
    order = np.argsort(inv, kind="stable")
    inv_sorted = inv[order]

    m_pad = -(-m // tm) * tm
    n_pad = -(-n // tn) * tn
    num_coarse_tiles = m_pad // tm
    num_fine_blocks = n_pad // tn

    tile_lo = np.arange(num_coarse_tiles, dtype=np.int64) * tm
    starts = np.searchsorted(inv_sorted, tile_lo, side="left")
    ends = np.searchsorted(inv_sorted, tile_lo + tm, side="left")
    blk_start = (starts // tn).astype(np.int32)
    blk_last = (np.maximum(ends - 1, starts) // tn).astype(np.int32)
    num_blk = np.where(ends > starts, blk_last - blk_start + 1, 0).astype(np.int32)
    max_blocks = max(int(num_blk.max()), 1)

    # Device-side: permute into sorted order and pack one (N, C+4) slab.
    perm = jnp.asarray(order.astype(np.int32))
    feats_s = jnp.take(feats.astype(jnp.float32), perm, axis=0)
    pts_s = jnp.take(points.astype(jnp.float32), perm, axis=0)
    cnt_s = jnp.take(counts.astype(jnp.float32), perm, axis=0)[:, None]
    slab = jnp.concatenate([feats_s, pts_s * cnt_s, cnt_s], axis=1)
    slab = jnp.pad(slab, ((0, n_pad - n), (0, 0)))
    idx_col = jnp.pad(jnp.asarray(inv_sorted), (0, n_pad - n),
                      constant_values=-1).reshape(n_pad, 1)

    out_slab = _pooled_reductions(
        jnp.asarray(blk_start), jnp.asarray(num_blk), idx_col, slab,
        c=c, tm=tm, tn=tn, num_coarse_tiles=num_coarse_tiles,
        max_blocks=max_blocks, m_pad=m_pad, num_fine_blocks=num_fine_blocks)

    down_feats = out_slab[:c, :m].T.astype(feats.dtype)
    down_points = out_slab[c:c + 3, :m].T
    down_counts = jnp.round(out_slab[c + 3, :m]).astype(jnp.int32)
    return (jnp.asarray(uniq.astype(np.int32)), down_feats, down_points,
            down_counts)


if __name__ == "__main__":
    key = jax.random.PRNGKey(0)
    k1, k2, k3, k4 = jax.random.split(key, 4)

    B, S, N, C = 2, 8, 64, 4          # batch, spatial extent, fine voxels, channels

    # unique fine-voxel coordinates (stride-1 lattice)
    flat = jax.random.permutation(k1, B * S * S * S)[:N]
    b = flat // (S * S * S)
    r = flat % (S * S * S)
    x, r = r // (S * S), r % (S * S)
    y, z = r // S, r % S
    coords = jnp.stack([b, x, y, z], axis=1).astype(jnp.int32)

    feats = jax.random.normal(k2, (N, C), dtype=jnp.float32)
    points = coords[:, 1:].astype(jnp.float32) + jax.random.uniform(k3, (N, 3))
    counts = jax.random.randint(k4, (N,), 1, 9, dtype=jnp.int32)

    down_coords, down_feats, down_points, down_counts = max_pool_with_points(
        coords, feats, points, counts)
    jax.block_until_ready((down_coords, down_feats, down_points, down_counts))

    # pure-JAX reference (segment ops) for correctness
    c_np = np.asarray(coords)
    coarse = np.concatenate([c_np[:, :1], np.floor_divide(c_np[:, 1:], 2) * 2], 1)
    _, inv = np.unique(coarse, axis=0, return_inverse=True)
    seg = jnp.asarray(np.asarray(inv).reshape(-1).astype(np.int32))
    M = down_coords.shape[0]
    ref_f = jax.ops.segment_max(feats, seg, num_segments=M)
    ref_c = jax.ops.segment_sum(counts.astype(jnp.float32), seg, num_segments=M)
    ref_p = jax.ops.segment_sum(points * counts[:, None].astype(jnp.float32),
                                seg, num_segments=M) / ref_c[:, None]

    assert np.allclose(np.asarray(down_feats), np.asarray(ref_f), atol=1e-5)
    assert np.allclose(np.asarray(down_points), np.asarray(ref_p), atol=1e-5)
    assert np.array_equal(np.asarray(down_counts),
                          np.asarray(ref_c).astype(np.int32))
    print("KERNEL_OK")
</pallas_src>

<mosaic_0001>
module attributes {stable_mosaic.version = 11 : i64} {
  func.func @kernel(%arg0: i32, %arg1: i32, %arg2: memref<1xi32, #tpu.memory_space<smem>>, %arg3: memref<1xi32, #tpu.memory_space<smem>>, %arg4: memref<256x1xi32, #tpu.memory_space<vmem>>, %arg5: memref<256x8xf32, #tpu.memory_space<vmem>>, %arg6: memref<8x128xf32, #tpu.memory_space<vmem>>) attributes {dimension_semantics = [#tpu.dimension_semantics<parallel>, #tpu.dimension_semantics<arbitrary>], iteration_bounds = array<i64: 1, 1>, scalar_prefetch = 2 : i64, scratch_operands = 0 : i64, tpu.core_type = #tpu.core_type<tc>, window_params = [{transform_indices = @transform_0, window_bounds = array<i64: 256, 1>}, {transform_indices = @transform_1, window_bounds = array<i64: 256, 8>}, {transform_indices = @transform_2, window_bounds = array<i64: 8, 128>}]} {
    %c0_i32 = arith.constant 0 : i32
    %0 = arith.cmpi eq, %arg1, %c0_i32 : i32
    %1 = arith.extui %0 : i1 to i32
    %c0_i32_0 = arith.constant 0 : i32
    %2 = arith.cmpi ne, %1, %c0_i32_0 : i32
    scf.if %2 {
      %cst = arith.constant 0xFF800000 : f32
      %11 = vector.broadcast %cst : f32 to vector<4x128xf32>
      %cst_4 = arith.constant 0.000000e+00 : f32
      %12 = vector.broadcast %cst_4 : f32 to vector<4x128xf32>
      %13 = tpu.concatenate %11, %12 in 0 : vector<4x128xf32>, vector<4x128xf32> -> vector<8x128xf32>
      %c0 = arith.constant 0 : index
      %c0_5 = arith.constant 0 : index
      %14 = vector.load %arg6[%c0, %c0_5] : memref<8x128xf32, #tpu.memory_space<vmem>>, vector<8x128xf32>
      tpu.vector_store %arg6[%c0, %c0_5], %13 {strides = array<i32>} : memref<8x128xf32, #tpu.memory_space<vmem>>, vector<8x128xf32>,
    } else {
    }
    %3 = arith.index_cast %arg0 : i32 to index
    %4 = memref.load %arg3[%3] : memref<1xi32, #tpu.memory_space<smem>>
    %5 = arith.cmpi slt, %arg1, %4 : i32
    %6 = arith.extui %5 : i1 to i32
    %c0_i32_1 = arith.constant 0 : i32
    %7 = arith.cmpi ne, %6, %c0_i32_1 : i32
    scf.if %7 {
      %c0 = arith.constant 0 : index
      %c0_4 = arith.constant 0 : index
      %11 = vector.load %arg4[%c0, %c0_4] : memref<256x1xi32, #tpu.memory_space<vmem>>, vector<256x1xi32>
      %c128_i32 = arith.constant 128 : i32
      %12 = arith.muli %arg0, %c128_i32 : i32
      %13 = tpu.iota {dimensions = array<i32: 1>} : vector<1x128xi32>
      %14 = vector.broadcast %12 : i32 to vector<1x128xi32>
      %15 = arith.addi %14, %13 : vector<1x128xi32>
      %16 = vector.broadcast %11 : vector<256x1xi32> to vector<256x128xi32>
      %17 = vector.broadcast %15 : vector<1x128xi32> to vector<256x128xi32>
      %18 = arith.cmpi eq, %16, %17 : vector<256x128xi32>
      %c0_5 = arith.constant 0 : index
      %c0_6 = arith.constant 0 : index
      %19 = vector.load %arg5[%c0_5, %c0_6] : memref<256x8xf32, #tpu.memory_space<vmem>>, vector<256x8xf32>
      %c0_7 = arith.constant 0 : index
      %c0_8 = arith.constant 0 : index
      %20 = vector.load %arg6[%c0_7, %c0_8] : memref<8x128xf32, #tpu.memory_space<vmem>>, vector<8x128xf32>
      %21 = vector.extract_strided_slice %19 {offsets = [0, 4], sizes = [256, 4], strides = [1, 1]} : vector<256x8xf32> to vector<256x4xf32>
      %22 = arith.extui %18 : vector<256x128xi1> to vector<256x128xi32>
      %23 = arith.sitofp %22 : vector<256x128xi32> to vector<256x128xf32>
      %cst = arith.constant dense<0.000000e+00> : vector<4x128xf32>
      %24 = tpu.matmul %21, %23, %cst {dimension_numbers = #tpu.dot_dimension_numbers<[0], [0], [1], [1], [0, 1, 1, 1], [], []>, precision = #tpu.contract_precision<fp32>} : vector<256x4xf32>, vector<256x128xf32>, vector<4x128xf32> -> vector<4x128xf32>
      %25 = vector.extract_strided_slice %19 {offsets = [0, 0], sizes = [256, 1], strides = [1, 1]} : vector<256x8xf32> to vector<256x1xf32>
      %cst_9 = arith.constant 0xFF800000 : f32
      %26 = vector.shape_cast %25 : vector<256x1xf32> to vector<256x1xf32>
      %27 = vector.broadcast %26 : vector<256x1xf32> to vector<256x128xf32>
      %28 = vector.broadcast %cst_9 : f32 to vector<256x128xf32>
      %29 = arith.select %18, %27, %28 : vector<256x128xi1>, vector<256x128xf32>
      %cst_10 = arith.constant dense<0xFF800000> : vector<128xf32>
      %30 = vector.multi_reduction <maximumf>, %29, %cst_10 [0] : vector<256x128xf32> to vector<128xf32>
      %31 = vector.shape_cast %30 : vector<128xf32> to vector<1x128xf32>
      %32 = vector.extract_strided_slice %19 {offsets = [0, 1], sizes = [256, 1], strides = [1, 1]} : vector<256x8xf32> to vector<256x1xf32>
      %cst_11 = arith.constant 0xFF800000 : f32
      %33 = vector.shape_cast %32 : vector<256x1xf32> to vector<256x1xf32>
      %34 = vector.broadcast %33 : vector<256x1xf32> to vector<256x128xf32>
      %35 = vector.broadcast %cst_11 : f32 to vector<256x128xf32>
      %36 = arith.select %18, %34, %35 : vector<256x128xi1>, vector<256x128xf32>
      %cst_12 = arith.constant dense<0xFF800000> : vector<128xf32>
      %37 = vector.multi_reduction <maximumf>, %36, %cst_12 [0] : vector<256x128xf32> to vector<128xf32>
      %38 = vector.shape_cast %37 : vector<128xf32> to vector<1x128xf32>
      %39 = vector.extract_strided_slice %19 {offsets = [0, 2], sizes = [256, 1], strides = [1, 1]} : vector<256x8xf32> to vector<256x1xf32>
      %cst_13 = arith.constant 0xFF800000 : f32
      %40 = vector.shape_cast %39 : vector<256x1xf32> to vector<256x1xf32>
      %41 = vector.broadcast %40 : vector<256x1xf32> to vector<256x128xf32>
      %42 = vector.broadcast %cst_13 : f32 to vector<256x128xf32>
      %43 = arith.select %18, %41, %42 : vector<256x128xi1>, vector<256x128xf32>
      %cst_14 = arith.constant dense<0xFF800000> : vector<128xf32>
      %44 = vector.multi_reduction <maximumf>, %43, %cst_14 [0] : vector<256x128xf32> to vector<128xf32>
      %45 = vector.shape_cast %44 : vector<128xf32> to vector<1x128xf32>
      %46 = vector.extract_strided_slice %19 {offsets = [0, 3], sizes = [256, 1], strides = [1, 1]} : vector<256x8xf32> to vector<256x1xf32>
      %cst_15 = arith.constant 0xFF800000 : f32
      %47 = vector.shape_cast %46 : vector<256x1xf32> to vector<256x1xf32>
      %48 = vector.broadcast %47 : vector<256x1xf32> to vector<256x128xf32>
      %49 = vector.broadcast %cst_15 : f32 to vector<256x128xf32>
      %50 = arith.select %18, %48, %49 : vector<256x128xi1>, vector<256x128xf32>
      %cst_16 = arith.constant dense<0xFF800000> : vector<128xf32>
      %51 = vector.multi_reduction <maximumf>, %50, %cst_16 [0] : vector<256x128xf32> to vector<128xf32>
      %52 = vector.shape_cast %51 : vector<128xf32> to vector<1x128xf32>
      %53 = vector.extract_strided_slice %20 {offsets = [0, 0], sizes = [4, 128], strides = [1, 1]} : vector<8x128xf32> to vector<4x128xf32>
      %54 = tpu.concatenate %31, %38, %45, %52 in 0 : vector<1x128xf32>, vector<1x128xf32>, vector<1x128xf32>, vector<1x128xf32> -> vector<4x128xf32>
      %55 = arith.maximumf %53, %54 : vector<4x128xf32>
      %56 = vector.extract_strided_slice %20 {offsets = [4, 0], sizes = [4, 128], strides = [1, 1]} : vector<8x128xf32> to vector<4x128xf32>
      %57 = arith.addf %56, %24 : vector<4x128xf32>
      %58 = tpu.concatenate %55, %57 in 0 : vector<4x128xf32>, vector<4x128xf32> -> vector<8x128xf32>
      %c0_17 = arith.constant 0 : index
      %c0_18 = arith.constant 0 : index
      %59 = vector.load %arg6[%c0_17, %c0_18] : memref<8x128xf32, #tpu.memory_space<vmem>>, vector<8x128xf32>
      tpu.vector_store %arg6[%c0_17, %c0_18], %58 {strides = array<i32>} : memref<8x128xf32, #tpu.memory_space<vmem>>, vector<8x128xf32>,
    } else {
    }
    %c0_i32_2 = arith.constant 0 : i32
    %8 = arith.cmpi eq, %arg1, %c0_i32_2 : i32
    %9 = arith.extui %8 : i1 to i32
    %c0_i32_3 = arith.constant 0 : i32
    %10 = arith.cmpi ne, %9, %c0_i32_3 : i32
    scf.if %10 {
      %c0 = arith.constant 0 : index
      %c0_4 = arith.constant 0 : index
      %11 = vector.load %arg6[%c0, %c0_4] : memref<8x128xf32, #tpu.memory_space<vmem>>, vector<8x128xf32>
      %12 = vector.extract_strided_slice %11 {offsets = [7, 0], sizes = [1, 128], strides = [1, 1]} : vector<8x128xf32> to vector<1x128xf32>
      %cst = arith.constant 1.000000e+00 : f32
      %13 = vector.broadcast %cst : f32 to vector<1x128xf32>
      %14 = arith.maximumf %12, %13 : vector<1x128xf32>
      %15 = vector.extract_strided_slice %11 {offsets = [0, 0], sizes = [4, 128], strides = [1, 1]} : vector<8x128xf32> to vector<4x128xf32>
      %16 = vector.extract_strided_slice %11 {offsets = [4, 0], sizes = [3, 128], strides = [1, 1]} : vector<8x128xf32> to vector<3x128xf32>
      %17 = vector.broadcast %14 : vector<1x128xf32> to vector<3x128xf32>
      %18 = arith.divf %16, %17 : vector<3x128xf32>
      %19 = tpu.concatenate %15, %18, %12 in 0 : vector<4x128xf32>, vector<3x128xf32>, vector<1x128xf32> -> vector<8x128xf32>
      %c0_5 = arith.constant 0 : index
      %c0_6 = arith.constant 0 : index
      %20 = vector.load %arg6[%c0_5, %c0_6] : memref<8x128xf32, #tpu.memory_space<vmem>>, vector<8x128xf32>
      tpu.vector_store %arg6[%c0_5, %c0_6], %19 {strides = array<i32>} : memref<8x128xf32, #tpu.memory_space<vmem>>, vector<8x128xf32>,
    } else {
    }
    return
  }
  func.func @transform_0(%arg0: i32, %arg1: i32, %arg2: memref<1xi32, #tpu.memory_space<smem>>, %arg3: memref<1xi32, #tpu.memory_space<smem>>) -> (i32, i32) {
    %0 = arith.index_cast %arg0 : i32 to index
    %1 = memref.load %arg2[%0] : memref<1xi32, #tpu.memory_space<smem>>
    %2 = arith.addi %1, %arg1 : i32
    %c0_i32 = arith.constant 0 : i32
    %3 = arith.minsi %2, %c0_i32 : i32
    %c0_i32_0 = arith.constant 0 : i32
    %c0_i32_1 = arith.constant 0 : i32
    return %3, %c0_i32_0 : i32, i32
  }
  func.func @transform_1(%arg0: i32, %arg1: i32, %arg2: memref<1xi32, #tpu.memory_space<smem>>, %arg3: memref<1xi32, #tpu.memory_space<smem>>) -> (i32, i32) {
    %0 = arith.index_cast %arg0 : i32 to index
    %1 = memref.load %arg2[%0] : memref<1xi32, #tpu.memory_space<smem>>
    %2 = arith.addi %1, %arg1 : i32
    %c0_i32 = arith.constant 0 : i32
    %3 = arith.minsi %2, %c0_i32 : i32
    %c0_i32_0 = arith.constant 0 : i32
    %c0_i32_1 = arith.constant 0 : i32
    return %3, %c0_i32_0 : i32, i32
  }
  func.func @transform_2(%arg0: i32, %arg1: i32, %arg2: memref<1xi32, #tpu.memory_space<smem>>, %arg3: memref<1xi32, #tpu.memory_space<smem>>) -> (i32, i32) {
    %c0_i32 = arith.constant 0 : i32
    %c0_i32_0 = arith.constant 0 : i32
    return %c0_i32, %arg0 : i32, i32
  }
}

</mosaic_0001>

<llo_original>
// kernel: tpu_custom_call.1
$region0: #{tpu_custom_call.1}
  #allocation0 [shape = 'u32[]', space=smem, size = 0x4, offset = 0x4, fixed_abs, tag = 'smem constant byte address 0x4 - core index']
  #allocation1 [shape = 'u32[144,128]{1,0:T(1,128)}', space=vmem, size = 0x12000, scoped, tag = 'internal scratch']
  #allocation2 [shape = 's32[1]{0}', space=sflag, size = 0x4, scoped, tag = 'scoped memory for tpu_custom_call.1']
  #allocation3 [shape = 's32[1]{0:T(128)S(6)}', space=smem, size = 0x200, scoped, tag = 'prefetched SMEM operand 0']
  #allocation4 [shape = 's32[1]{0:T(128)S(6)}', space=smem, size = 0x200, scoped, tag = 'prefetched SMEM operand 1']
  %s0 = inlined_call_operand.<no memory space> [shape: s32[1], index: 0, kind: input, shape index: {}]
  %s1 = inlined_call_operand.<no memory space> [shape: s32[1], index: 1, kind: input, shape index: {}]
  %s2 = inlined_call_operand.vmem [shape: s32[256,1], index: 2, kind: input, shape index: {}]
  %s3 = inlined_call_operand.vmem [shape: f32[256,8], index: 3, kind: input, shape index: {}]
  %s4 = inlined_call_operand.hbm [shape: f32[8,128], index: 4, kind: output, shape index: {}]
  %s5 = sld [smem:[#allocation0]]
  $region30: #{tpu_custom_call.1} parent=0
    _
  %s7 = ssub.s32 1, %s5
  %s8 = scalar_select 0, %s7, %s5
  %9 = sst [smem:[#allocation3]] %s0
  %10 = sst [smem:[#allocation4]] %s1
  $region1: #{tpu_custom_call.1} parent=0
    #allocation5 [shape = 'u8[4096]{0}', space=vmem, size = 0x1000, scoped, tag = 'output window, operand 0, single buffered']
    #allocation6 [shape = 's32[1]{0}', space=sflag, size = 0x4, scoped, tag = 'scoped memory for tpu_custom_call.1']
    %11 = vsyncpa [#allocation6], 0
    // Predicated region
    $region2: #{tpu_custom_call.1} parent=1 // pred_check
      _
    $region3: #{tpu_custom_call.1} parent=1 // pred_check_branch
      %13 = sbr.rel (0) target = $region5
    $region4: #{tpu_custom_call.1} parent=1 // pred_region
      %s14 = sld [smem:[#allocation3]]
      %s15 = sadd.s32 %s14, 0
      %p16 = scmp.lt.s32.totalorder %s15, 0
      %s17 = scalar_select %p16, %s15, 0
      %s18 = smul.u32 32, %s17
      %p19 = scmp.lt.s32.totalorder %s18, 31
      %s20 = scalar_select %p19, %s18, 31
      %s21 = smul.addr %s20, 8
      %s22 = scalar_lea.vmem %s2, %s21
      %s23 = sld [smem:[#allocation3]]
      %s24 = sadd.s32 %s23, 0
      %p25 = scmp.lt.s32.totalorder %s24, 0
      %s26 = scalar_select %p25, %s24, 0
      %s27 = smul.u32 32, %s26
    $region5: #{tpu_custom_call.1} parent=1 // pred_fallthru
      _
    // Predicated region
    $region6: #{tpu_custom_call.1} parent=1 // pred_check
      _
    $region7: #{tpu_custom_call.1} parent=1 // pred_check_branch
      %29 = sbr.rel (0) target = $region9
    $region8: #{tpu_custom_call.1} parent=1 // pred_region
      %s30 = sld [smem:[#allocation3]]
      %s31 = sadd.s32 %s30, 0
      %p32 = scmp.lt.s32.totalorder %s31, 0
      %s33 = scalar_select %p32, %s31, 0
      %s34 = smul.u32 32, %s33
      %p35 = scmp.lt.s32.totalorder %s34, 31
      %s36 = scalar_select %p35, %s34, 31
      %s37 = smul.addr %s36, 8
      %s38 = scalar_lea.vmem %s3, %s37
      %s39 = sld [smem:[#allocation3]]
      %s40 = sadd.s32 %s39, 0
      %p41 = scmp.lt.s32.totalorder %s40, 0
      %s42 = scalar_select %p41, %s40, 0
      %s43 = smul.u32 32, %s42
    $region9: #{tpu_custom_call.1} parent=1 // pred_fallthru
      _
    %s44 = sld [smem:[#allocation3]]
    %s45 = sadd.s32 %s44, 0
    %p46 = scmp.lt.s32.totalorder %s45, 0
    %s47 = scalar_select %p46, %s45, 0
    %s48 = smul.u32 32, %s47
    %p49 = scmp.lt.s32.totalorder %s48, 31
    %s50 = scalar_select %p49, %s48, 31
    %s51 = smul.addr %s50, 8
    %s52 = scalar_lea.vmem %s2, %s51
    %s53 = sld [smem:[#allocation3]]
    %s54 = sadd.s32 %s53, 0
    %p55 = scmp.lt.s32.totalorder %s54, 0
    %s56 = scalar_select %p55, %s54, 0
    %s57 = smul.u32 32, %s56
    %p58 = scmp.lt.s32.totalorder %s57, 31
    %s59 = scalar_select %p58, %s57, 31
    %s60 = smul.addr %s59, 8
    %s61 = scalar_lea.vmem %s3, %s60
    %s62 = sld [smem:[#allocation3]]
    %s63 = sadd.s32 %s62, 0
    %p64 = scmp.lt.s32.totalorder %s63, 0
    %s65 = scalar_select %p64, %s63, 0
    %s66 = smul.u32 32, %s65
    %p67 = scmp.lt.s32.totalorder %s66, 31
    %s68 = scalar_select %p67, %s66, 31
    %s69 = smul.addr %s68, 8
    %s70 = scalar_lea.vmem %s2, %s69
    %s71 = sld [smem:[#allocation3]]
    %s72 = sadd.s32 %s71, 0
    %p73 = scmp.lt.s32.totalorder %s72, 0
    %s74 = scalar_select %p73, %s72, 0
    %s75 = smul.u32 32, %s74
    %s76 = sld [smem:[#allocation3]]
    %s77 = sadd.s32 %s76, 0
    %p78 = scmp.lt.s32.totalorder %s77, 0
    %s79 = scalar_select %p78, %s77, 0
    %s80 = smul.u32 32, %s79
    %p81 = scmp.lt.s32.totalorder %s80, 31
    %s82 = scalar_select %p81, %s80, 31
    %s83 = smul.addr %s82, 8
    %s84 = scalar_lea.vmem %s3, %s83
    %s85 = sld [smem:[#allocation3]]
    %s86 = sadd.s32 %s85, 0
    %p87 = scmp.lt.s32.totalorder %s86, 0
    %s88 = scalar_select %p87, %s86, 0
    %s89 = smul.u32 32, %s88
    %p90 = scmp.eq.s32.totalorder 0, 0
    // Predicated region
    $region10: #{tpu_custom_call.1} parent=1 // pred_check
      %p91 = pneg %p90
    $region11: #{tpu_custom_call.1} parent=1 // pred_check_branch
      %93 = sbr.rel (%p91) target = $region13
    $region12: #{tpu_custom_call.1} parent=1 // pred_region
      %vm94 = vcmask 1043456
      %v95 = vsel %vm94, -inf, 0.0
      %96 = vst [vmem:[#allocation5] sm:$0xff] %v95
    $region13: #{tpu_custom_call.1} parent=1 // pred_fallthru
      _
    %s97 = sld [smem:[#allocation4]]
    %p98 = scmp.lt.s32.totalorder 0, %s97
    // Predicated region
    $region14: #{tpu_custom_call.1} parent=1 // pred_check
      %p99 = pneg %p98
    $region15: #{tpu_custom_call.1} parent=1 // pred_check_branch
      %101 = sbr.rel (%p99) target = $region17
    $region16: #{tpu_custom_call.1} parent=1 // pred_region
      %v102 = vld [vmem:[%s70] sm:$0xff]
      %v103 = vld [vmem:[%s70 + $0x8] sm:$0xff]
      %v104 = vld [vmem:[%s70 + $0x10] sm:$0xff]
      %v105 = vld [vmem:[%s70 + $0x18] sm:$0xff]
      %v106 = vld [vmem:[%s70 + $0x20] sm:$0xff]
      %v107 = vld [vmem:[%s70 + $0x28] sm:$0xff]
      %v108 = vld [vmem:[%s70 + $0x30] sm:$0xff]
      %v109 = vld [vmem:[%s70 + $0x38] sm:$0xff]
      %v110 = vld [vmem:[%s70 + $0x40] sm:$0xff]
      %v111 = vld [vmem:[%s70 + $0x48] sm:$0xff]
      %v112 = vld [vmem:[%s70 + $0x50] sm:$0xff]
      %v113 = vld [vmem:[%s70 + $0x58] sm:$0xff]
      %v114 = vld [vmem:[%s70 + $0x60] sm:$0xff]
      %v115 = vld [vmem:[%s70 + $0x68] sm:$0xff]
      %v116 = vld [vmem:[%s70 + $0x70] sm:$0xff]
      %v117 = vld [vmem:[%s70 + $0x78] sm:$0xff]
      %v118 = vld [vmem:[%s70 + $0x80] sm:$0xff]
      %v119 = vld [vmem:[%s70 + $0x88] sm:$0xff]
      %v120 = vld [vmem:[%s70 + $0x90] sm:$0xff]
      %v121 = vld [vmem:[%s70 + $0x98] sm:$0xff]
      %v122 = vld [vmem:[%s70 + $0xa0] sm:$0xff]
      %v123 = vld [vmem:[%s70 + $0xa8] sm:$0xff]
      %v124 = vld [vmem:[%s70 + $0xb0] sm:$0xff]
      %v125 = vld [vmem:[%s70 + $0xb8] sm:$0xff]
      %v126 = vld [vmem:[%s70 + $0xc0] sm:$0xff]
      %v127 = vld [vmem:[%s70 + $0xc8] sm:$0xff]
      %v128 = vld [vmem:[%s70 + $0xd0] sm:$0xff]
      %v129 = vld [vmem:[%s70 + $0xd8] sm:$0xff]
      %v130 = vld [vmem:[%s70 + $0xe0] sm:$0xff]
      %v131 = vld [vmem:[%s70 + $0xe8] sm:$0xff]
      %v132 = vld [vmem:[%s70 + $0xf0] sm:$0xff]
      %v133 = vld [vmem:[%s70 + $0xf8] sm:$0xff]
      %s134 = smul.u32 0, 128
      %v135 = vlaneseq
      %v136 = vand.u32 %v135, 127
      %v137 = vstv %s134
      %v138 = vadd.s32 %v137, %v136
      %139 = vset.pattern.permute.xlu0 0
      %140 = vperm.xlu0 %139, %v102
      %v141 = vpop.permute.xlu0 %140
      %142 = vset.pattern.permute.xlu0 0
      %143 = vperm.xlu0 %142, %v103
      %v144 = vpop.permute.xlu0 %143
      %145 = vset.pattern.permute.xlu0 0
      %146 = vperm.xlu0 %145, %v104
      %v147 = vpop.permute.xlu0 %146
      %148 = vset.pattern.permute.xlu0 0
      %149 = vperm.xlu0 %148, %v105
      %v150 = vpop.permute.xlu0 %149
      %151 = vset.pattern.permute.xlu0 0
      %152 = vperm.xlu0 %151, %v106
      %v153 = vpop.permute.xlu0 %152
      %154 = vset.pattern.permute.xlu0 0
      %155 = vperm.xlu0 %154, %v107
      %v156 = vpop.permute.xlu0 %155
      %157 = vset.pattern.permute.xlu0 0
      %158 = vperm.xlu0 %157, %v108
      %v159 = vpop.permute.xlu0 %158
      %160 = vset.pattern.permute.xlu0 0
      %161 = vperm.xlu0 %160, %v109
      %v162 = vpop.permute.xlu0 %161
      %163 = vset.pattern.permute.xlu0 0
      %164 = vperm.xlu0 %163, %v110
      %v165 = vpop.permute.xlu0 %164
      %166 = vset.pattern.permute.xlu0 0
      %167 = vperm.xlu0 %166, %v111
      %v168 = vpop.permute.xlu0 %167
      %169 = vset.pattern.permute.xlu0 0
      %170 = vperm.xlu0 %169, %v112
      %v171 = vpop.permute.xlu0 %170
      %172 = vset.pattern.permute.xlu0 0
      %173 = vperm.xlu0 %172, %v113
      %v174 = vpop.permute.xlu0 %173
      %175 = vset.pattern.permute.xlu0 0
      %176 = vperm.xlu0 %175, %v114
      %v177 = vpop.permute.xlu0 %176
      %178 = vset.pattern.permute.xlu0 0
      %179 = vperm.xlu0 %178, %v115
      %v180 = vpop.permute.xlu0 %179
      %181 = vset.pattern.permute.xlu0 0
      %182 = vperm.xlu0 %181, %v116
      %v183 = vpop.permute.xlu0 %182
      %184 = vset.pattern.permute.xlu0 0
      %185 = vperm.xlu0 %184, %v117
      %v186 = vpop.permute.xlu0 %185
      %187 = vset.pattern.permute.xlu0 0
      %188 = vperm.xlu0 %187, %v118
      %v189 = vpop.permute.xlu0 %188
      %190 = vset.pattern.permute.xlu0 0
      %191 = vperm.xlu0 %190, %v119
      %v192 = vpop.permute.xlu0 %191
      %193 = vset.pattern.permute.xlu0 0
      %194 = vperm.xlu0 %193, %v120
      %v195 = vpop.permute.xlu0 %194
      %196 = vset.pattern.permute.xlu0 0
      %197 = vperm.xlu0 %196, %v121
      %v198 = vpop.permute.xlu0 %197
      %199 = vset.pattern.permute.xlu0 0
      %200 = vperm.xlu0 %199, %v122
      %v201 = vpop.permute.xlu0 %200
      %202 = vset.pattern.permute.xlu0 0
      %203 = vperm.xlu0 %202, %v123
      %v204 = vpop.permute.xlu0 %203
      %205 = vset.pattern.permute.xlu0 0
      %206 = vperm.xlu0 %205, %v124
      %v207 = vpop.permute.xlu0 %206
      %208 = vset.pattern.permute.xlu0 0
      %209 = vperm.xlu0 %208, %v125
      %v210 = vpop.permute.xlu0 %209
      %211 = vset.pattern.permute.xlu0 0
      %212 = vperm.xlu0 %211, %v126
      %v213 = vpop.permute.xlu0 %212
      %214 = vset.pattern.permute.xlu0 0
      %215 = vperm.xlu0 %214, %v127
      %v216 = vpop.permute.xlu0 %215
      %217 = vset.pattern.permute.xlu0 0
      %218 = vperm.xlu0 %217, %v128
      %v219 = vpop.permute.xlu0 %218
      %220 = vset.pattern.permute.xlu0 0
      %221 = vperm.xlu0 %220, %v129
      %v222 = vpop.permute.xlu0 %221
      %223 = vset.pattern.permute.xlu0 0
      %224 = vperm.xlu0 %223, %v130
      %v225 = vpop.permute.xlu0 %224
      %226 = vset.pattern.permute.xlu0 0
      %227 = vperm.xlu0 %226, %v131
      %v228 = vpop.permute.xlu0 %227
      %229 = vset.pattern.permute.xlu0 0
      %230 = vperm.xlu0 %229, %v132
      %v231 = vpop.permute.xlu0 %230
      %232 = vset.pattern.permute.xlu0 0
      %233 = vperm.xlu0 %232, %v133
      %v234 = vpop.permute.xlu0 %233
      %vm235 = vcmp.eq.s32.totalorder %v141, %v138
      %vm236 = vcmp.eq.s32.totalorder %v144, %v138
      %vm237 = vcmp.eq.s32.totalorder %v147, %v138
      %vm238 = vcmp.eq.s32.totalorder %v150, %v138
      %vm239 = vcmp.eq.s32.totalorder %v153, %v138
      %vm240 = vcmp.eq.s32.totalorder %v156, %v138
      %vm241 = vcmp.eq.s32.totalorder %v159, %v138
      %vm242 = vcmp.eq.s32.totalorder %v162, %v138
      %vm243 = vcmp.eq.s32.totalorder %v165, %v138
      %vm244 = vcmp.eq.s32.totalorder %v168, %v138
      %vm245 = vcmp.eq.s32.totalorder %v171, %v138
      %vm246 = vcmp.eq.s32.totalorder %v174, %v138
      %vm247 = vcmp.eq.s32.totalorder %v177, %v138
      %vm248 = vcmp.eq.s32.totalorder %v180, %v138
      %vm249 = vcmp.eq.s32.totalorder %v183, %v138
      %vm250 = vcmp.eq.s32.totalorder %v186, %v138
      %vm251 = vcmp.eq.s32.totalorder %v189, %v138
      %vm252 = vcmp.eq.s32.totalorder %v192, %v138
      %vm253 = vcmp.eq.s32.totalorder %v195, %v138
      %vm254 = vcmp.eq.s32.totalorder %v198, %v138
      %vm255 = vcmp.eq.s32.totalorder %v201, %v138
      %vm256 = vcmp.eq.s32.totalorder %v204, %v138
      %vm257 = vcmp.eq.s32.totalorder %v207, %v138
      %vm258 = vcmp.eq.s32.totalorder %v210, %v138
      %vm259 = vcmp.eq.s32.totalorder %v213, %v138
      %vm260 = vcmp.eq.s32.totalorder %v216, %v138
      %vm261 = vcmp.eq.s32.totalorder %v219, %v138
      %vm262 = vcmp.eq.s32.totalorder %v222, %v138
      %vm263 = vcmp.eq.s32.totalorder %v225, %v138
      %vm264 = vcmp.eq.s32.totalorder %v228, %v138
      %vm265 = vcmp.eq.s32.totalorder %v231, %v138
      %vm266 = vcmp.eq.s32.totalorder %v234, %v138
      %v267 = vld [vmem:[%s84] sm:$0xff]
      %v268 = vld [vmem:[%s84 + $0x8] sm:$0xff]
      %v269 = vld [vmem:[%s84 + $0x10] sm:$0xff]
      %v270 = vld [vmem:[%s84 + $0x18] sm:$0xff]
      %v271 = vld [vmem:[%s84 + $0x20] sm:$0xff]
      %v272 = vld [vmem:[%s84 + $0x28] sm:$0xff]
      %v273 = vld [vmem:[%s84 + $0x30] sm:$0xff]
      %v274 = vld [vmem:[%s84 + $0x38] sm:$0xff]
      %v275 = vld [vmem:[%s84 + $0x40] sm:$0xff]
      %v276 = vld [vmem:[%s84 + $0x48] sm:$0xff]
      %v277 = vld [vmem:[%s84 + $0x50] sm:$0xff]
      %v278 = vld [vmem:[%s84 + $0x58] sm:$0xff]
      %v279 = vld [vmem:[%s84 + $0x60] sm:$0xff]
      %v280 = vld [vmem:[%s84 + $0x68] sm:$0xff]
      %v281 = vld [vmem:[%s84 + $0x70] sm:$0xff]
      %v282 = vld [vmem:[%s84 + $0x78] sm:$0xff]
      %v283 = vld [vmem:[%s84 + $0x80] sm:$0xff]
      %v284 = vld [vmem:[%s84 + $0x88] sm:$0xff]
      %v285 = vld [vmem:[%s84 + $0x90] sm:$0xff]
      %v286 = vld [vmem:[%s84 + $0x98] sm:$0xff]
      %v287 = vld [vmem:[%s84 + $0xa0] sm:$0xff]
      %v288 = vld [vmem:[%s84 + $0xa8] sm:$0xff]
      %v289 = vld [vmem:[%s84 + $0xb0] sm:$0xff]
      %v290 = vld [vmem:[%s84 + $0xb8] sm:$0xff]
      %v291 = vld [vmem:[%s84 + $0xc0] sm:$0xff]
      %v292 = vld [vmem:[%s84 + $0xc8] sm:$0xff]
      %v293 = vld [vmem:[%s84 + $0xd0] sm:$0xff]
      %v294 = vld [vmem:[%s84 + $0xd8] sm:$0xff]
      %v295 = vld [vmem:[%s84 + $0xe0] sm:$0xff]
      %v296 = vld [vmem:[%s84 + $0xe8] sm:$0xff]
      %v297 = vld [vmem:[%s84 + $0xf0] sm:$0xff]
      %v298 = vld [vmem:[%s84 + $0xf8] sm:$0xff]
      %v299 = vld [vmem:[#allocation5] sm:$0xff]
      %v300 = vsel %vm235, 1, 0
      %v301 = vsel %vm236, 1, 0
      %v302 = vsel %vm237, 1, 0
      %v303 = vsel %vm238, 1, 0
      %v304 = vsel %vm239, 1, 0
      %v305 = vsel %vm240, 1, 0
      %v306 = vsel %vm241, 1, 0
      %v307 = vsel %vm242, 1, 0
      %v308 = vsel %vm243, 1, 0
      %v309 = vsel %vm244, 1, 0
      %v310 = vsel %vm245, 1, 0
      %v311 = vsel %vm246, 1, 0
      %v312 = vsel %vm247, 1, 0
      %v313 = vsel %vm248, 1, 0
      %v314 = vsel %vm249, 1, 0
      %v315 = vsel %vm250, 1, 0
      %v316 = vsel %vm251, 1, 0
      %v317 = vsel %vm252, 1, 0
      %v318 = vsel %vm253, 1, 0
      %v319 = vsel %vm254, 1, 0
      %v320 = vsel %vm255, 1, 0
      %v321 = vsel %vm256, 1, 0
      %v322 = vsel %vm257, 1, 0
      %v323 = vsel %vm258, 1, 0
      %v324 = vsel %vm259, 1, 0
      %v325 = vsel %vm260, 1, 0
      %v326 = vsel %vm261, 1, 0
      %v327 = vsel %vm262, 1, 0
      %v328 = vsel %vm263, 1, 0
      %v329 = vsel %vm264, 1, 0
      %v330 = vsel %vm265, 1, 0
      %v331 = vsel %vm266, 1, 0
      %v332 = vcvt.s32.f32 %v300
      %v333 = vcvt.s32.f32 %v301
      %v334 = vcvt.s32.f32 %v302
      %v335 = vcvt.s32.f32 %v303
      %v336 = vcvt.s32.f32 %v304
      %v337 = vcvt.s32.f32 %v305
      %v338 = vcvt.s32.f32 %v306
      %v339 = vcvt.s32.f32 %v307
      %v340 = vcvt.s32.f32 %v308
      %v341 = vcvt.s32.f32 %v309
      %v342 = vcvt.s32.f32 %v310
      %v343 = vcvt.s32.f32 %v311
      %v344 = vcvt.s32.f32 %v312
      %v345 = vcvt.s32.f32 %v313
      %v346 = vcvt.s32.f32 %v314
      %v347 = vcvt.s32.f32 %v315
      %v348 = vcvt.s32.f32 %v316
      %v349 = vcvt.s32.f32 %v317
      %v350 = vcvt.s32.f32 %v318
      %v351 = vcvt.s32.f32 %v319
      %v352 = vcvt.s32.f32 %v320
      %v353 = vcvt.s32.f32 %v321
      %v354 = vcvt.s32.f32 %v322
      %v355 = vcvt.s32.f32 %v323
      %v356 = vcvt.s32.f32 %v324
      %v357 = vcvt.s32.f32 %v325
      %v358 = vcvt.s32.f32 %v326
      %v359 = vcvt.s32.f32 %v327
      %v360 = vcvt.s32.f32 %v328
      %v361 = vcvt.s32.f32 %v329
      %v362 = vcvt.s32.f32 %v330
      %v363 = vcvt.s32.f32 %v331
      %396 = vrot.lane.b32.xlu0 %v267, 124
      %v397 = vpop.permute.xlu0 %396
      %398 = vrot.lane.b32.xlu0 %v268, 124
      %v399 = vpop.permute.xlu0 %398
      %400 = vrot.lane.b32.xlu0 %v269, 124
      %v401 = vpop.permute.xlu0 %400
      %402 = vrot.lane.b32.xlu0 %v270, 124
      %v403 = vpop.permute.xlu0 %402
      %404 = vrot.lane.b32.xlu0 %v271, 124
      %v405 = vpop.permute.xlu0 %404
      %406 = vrot.lane.b32.xlu0 %v272, 124
      %v407 = vpop.permute.xlu0 %406
      %408 = vrot.lane.b32.xlu0 %v273, 124
      %v409 = vpop.permute.xlu0 %408
      %410 = vrot.lane.b32.xlu0 %v274, 124
      %v411 = vpop.permute.xlu0 %410
      %412 = vrot.lane.b32.xlu0 %v275, 124
      %v413 = vpop.permute.xlu0 %412
      %414 = vrot.lane.b32.xlu0 %v276, 124
      %v415 = vpop.permute.xlu0 %414
      %416 = vrot.lane.b32.xlu0 %v277, 124
      %v417 = vpop.permute.xlu0 %416
      %418 = vrot.lane.b32.xlu0 %v278, 124
      %v419 = vpop.permute.xlu0 %418
      %420 = vrot.lane.b32.xlu0 %v279, 124
      %v421 = vpop.permute.xlu0 %420
      %422 = vrot.lane.b32.xlu0 %v280, 124
      %v423 = vpop.permute.xlu0 %422
      %424 = vrot.lane.b32.xlu0 %v281, 124
      %v425 = vpop.permute.xlu0 %424
      %426 = vrot.lane.b32.xlu0 %v282, 124
      %v427 = vpop.permute.xlu0 %426
      %428 = vrot.lane.b32.xlu0 %v283, 124
      %v429 = vpop.permute.xlu0 %428
      %430 = vrot.lane.b32.xlu0 %v284, 124
      %v431 = vpop.permute.xlu0 %430
      %432 = vrot.lane.b32.xlu0 %v285, 124
      %v433 = vpop.permute.xlu0 %432
      %434 = vrot.lane.b32.xlu0 %v286, 124
      %v435 = vpop.permute.xlu0 %434
      %436 = vrot.lane.b32.xlu0 %v287, 124
      %v437 = vpop.permute.xlu0 %436
      %438 = vrot.lane.b32.xlu0 %v288, 124
      %v439 = vpop.permute.xlu0 %438
      %440 = vrot.lane.b32.xlu0 %v289, 124
      %v441 = vpop.permute.xlu0 %440
      %442 = vrot.lane.b32.xlu0 %v290, 124
      %v443 = vpop.permute.xlu0 %442
      %444 = vrot.lane.b32.xlu0 %v291, 124
      %v445 = vpop.permute.xlu0 %444
      %446 = vrot.lane.b32.xlu0 %v292, 124
      %v447 = vpop.permute.xlu0 %446
      %448 = vrot.lane.b32.xlu0 %v293, 124
      %v449 = vpop.permute.xlu0 %448
      %450 = vrot.lane.b32.xlu0 %v294, 124
      %v451 = vpop.permute.xlu0 %450
      %452 = vrot.lane.b32.xlu0 %v295, 124
      %v453 = vpop.permute.xlu0 %452
      %454 = vrot.lane.b32.xlu0 %v296, 124
      %v455 = vpop.permute.xlu0 %454
      %456 = vrot.lane.b32.xlu0 %v297, 124
      %v457 = vpop.permute.xlu0 %456
      %458 = vrot.lane.b32.xlu0 %v298, 124
      %v459 = vpop.permute.xlu0 %458
      %492 = vxpose.xlu0.b32.start [1/16] %v397, 128
      %493 = vxpose.xlu0.b32.cont [2/16] %v399, 128
      %494 = vxpose.xlu0.b32.cont [3/16] %v401, 128
      %495 = vxpose.xlu0.b32.cont [4/16] %v403, 128
      %496 = vxpose.xlu0.b32.cont [5/16] %v405, 128
      %497 = vxpose.xlu0.b32.cont [6/16] %v407, 128
      %498 = vxpose.xlu0.b32.cont [7/16] %v409, 128
      %499 = vxpose.xlu0.b32.cont [8/16] %v411, 128
      %500 = vxpose.xlu0.b32.cont [9/16] %v413, 128
      %501 = vxpose.xlu0.b32.cont [10/16] %v415, 128
      %502 = vxpose.xlu0.b32.cont [11/16] %v417, 128
      %503 = vxpose.xlu0.b32.cont [12/16] %v419, 128
      %504 = vxpose.xlu0.b32.cont [13/16] %v421, 128
      %505 = vxpose.xlu0.b32.cont [14/16] %v423, 128
      %506 = vxpose.xlu0.b32.cont [15/16] %v425, 128
      %507 = vxpose.xlu0.b32.end [16/16] %v427, 128
      %v508 = vpop.trf.xlu0
      %v509 = vpop.trf.xlu0
      %v510 = vpop.trf.xlu0
      %v511 = vpop.trf.xlu0
      %v512 = vpop.trf.xlu0
      %v513 = vpop.trf.xlu0
      %v514 = vpop.trf.xlu0
      %v515 = vpop.trf.xlu0
      %v516 = vpop.trf.xlu0
      %v517 = vpop.trf.xlu0
      %v518 = vpop.trf.xlu0
      %v519 = vpop.trf.xlu0
      %v520 = vpop.trf.xlu0
      %v521 = vpop.trf.xlu0
      %v522 = vpop.trf.xlu0
      %v523 = vpop.trf.xlu0
      %524 = vxpose.xlu0.b32.start [1/16] %v429, 128
      %525 = vxpose.xlu0.b32.cont [2/16] %v431, 128
      %526 = vxpose.xlu0.b32.cont [3/16] %v433, 128
      %527 = vxpose.xlu0.b32.cont [4/16] %v435, 128
      %528 = vxpose.xlu0.b32.cont [5/16] %v437, 128
      %529 = vxpose.xlu0.b32.cont [6/16] %v439, 128
      %530 = vxpose.xlu0.b32.cont [7/16] %v441, 128
      %531 = vxpose.xlu0.b32.cont [8/16] %v443, 128
      %532 = vxpose.xlu0.b32.cont [9/16] %v445, 128
      %533 = vxpose.xlu0.b32.cont [10/16] %v447, 128
      %534 = vxpose.xlu0.b32.cont [11/16] %v449, 128
      %535 = vxpose.xlu0.b32.cont [12/16] %v451, 128
      %536 = vxpose.xlu0.b32.cont [13/16] %v453, 128
      %537 = vxpose.xlu0.b32.cont [14/16] %v455, 128
      %538 = vxpose.xlu0.b32.cont [15/16] %v457, 128
      %539 = vxpose.xlu0.b32.end [16/16] %v459, 128
      %v540 = vpop.trf.xlu0
      %v541 = vpop.trf.xlu0
      %v542 = vpop.trf.xlu0
      %v543 = vpop.trf.xlu0
      %v544 = vpop.trf.xlu0
      %v545 = vpop.trf.xlu0
      %v546 = vpop.trf.xlu0
      %v547 = vpop.trf.xlu0
      %v548 = vpop.trf.xlu0
      %v549 = vpop.trf.xlu0
      %v550 = vpop.trf.xlu0
      %v551 = vpop.trf.xlu0
      %v552 = vpop.trf.xlu0
      %v553 = vpop.trf.xlu0
      %v554 = vpop.trf.xlu0
      %v555 = vpop.trf.xlu0
      %556 = vmatprep.subr.mxu0 0.0
      %v557 = vand.u32 %v347, 4294901760
      %558 = vmatpush1.msra.mxu0 %v557
      %559 = vmatprep.subr.mxu0 0.0
      %v560 = vand.u32 %v346, 4294901760
      %561 = vmatpush1.msra.mxu0 %v560
      %562 = vmatprep.subr.mxu0 0.0
      %v563 = vand.u32 %v345, 4294901760
      %564 = vmatpush1.msra.mxu0 %v563
      %565 = vmatprep.subr.mxu0 0.0
      %v566 = vand.u32 %v344, 4294901760
      %567 = vmatpush1.msra.mxu0 %v566
      %568 = vmatprep.subr.mxu0 0.0
      %v569 = vand.u32 %v343, 4294901760
      %570 = vmatpush1.msra.mxu0 %v569
      %571 = vmatprep.subr.mxu0 0.0
      %v572 = vand.u32 %v342, 4294901760
      %573 = vmatpush1.msra.mxu0 %v572
      %574 = vmatprep.subr.mxu0 0.0
      %v575 = vand.u32 %v341, 4294901760
      %576 = vmatpush1.msra.mxu0 %v575
      %577 = vmatprep.subr.mxu0 0.0
      %v578 = vand.u32 %v340, 4294901760
      %579 = vmatpush1.msra.mxu0 %v578
      %580 = vmatprep.subr.mxu0 0.0
      %v581 = vand.u32 %v339, 4294901760
      %582 = vmatpush1.msra.mxu0 %v581
      %583 = vmatprep.subr.mxu0 0.0
      %v584 = vand.u32 %v338, 4294901760
      %585 = vmatpush1.msra.mxu0 %v584
      %586 = vmatprep.subr.mxu0 0.0
      %v587 = vand.u32 %v337, 4294901760
      %588 = vmatpush1.msra.mxu0 %v587
      %589 = vmatprep.subr.mxu0 0.0
      %v590 = vand.u32 %v336, 4294901760
      %591 = vmatpush1.msra.mxu0 %v590
      %592 = vmatprep.subr.mxu0 0.0
      %v593 = vand.u32 %v335, 4294901760
      %594 = vmatpush1.msra.mxu0 %v593
      %595 = vmatprep.subr.mxu0 0.0
      %v596 = vand.u32 %v334, 4294901760
      %597 = vmatpush1.msra.mxu0 %v596
      %598 = vmatprep.subr.mxu0 0.0
      %v599 = vand.u32 %v333, 4294901760
      %600 = vmatpush1.msra.mxu0 %v599
      %601 = vmatprep.subr.mxu0 0.0
      %v602 = vand.u32 %v332, 4294901760
      %603 = vmatpush1.msra.mxu0 %v602
      %604 = vmatprep.subr.mxu0 0.0
      %v605 = vand.u32 %v363, 4294901760
      %606 = vmatpush2.msra.mxu0 %v605
      %607 = vmatprep.subr.mxu0 0.0
      %v608 = vand.u32 %v362, 4294901760
      %609 = vmatpush2.msra.mxu0 %v608
      %610 = vmatprep.subr.mxu0 0.0
      %v611 = vand.u32 %v361, 4294901760
      %612 = vmatpush2.msra.mxu0 %v611
      %613 = vmatprep.subr.mxu0 0.0
      %v614 = vand.u32 %v360, 4294901760
      %615 = vmatpush2.msra.mxu0 %v614
      %616 = vmatprep.subr.mxu0 0.0
      %v617 = vand.u32 %v359, 4294901760
      %618 = vmatpush2.msra.mxu0 %v617
      %619 = vmatprep.subr.mxu0 0.0
      %v620 = vand.u32 %v358, 4294901760
      %621 = vmatpush2.msra.mxu0 %v620
      %622 = vmatprep.subr.mxu0 0.0
      %v623 = vand.u32 %v357, 4294901760
      %624 = vmatpush2.msra.mxu0 %v623
      %625 = vmatprep.subr.mxu0 0.0
      %v626 = vand.u32 %v356, 4294901760
      %627 = vmatpush2.msra.mxu0 %v626
      %628 = vmatprep.subr.mxu0 0.0
      %v629 = vand.u32 %v355, 4294901760
      %630 = vmatpush2.msra.mxu0 %v629
      %631 = vmatprep.subr.mxu0 0.0
      %v632 = vand.u32 %v354, 4294901760
      %633 = vmatpush2.msra.mxu0 %v632
      %634 = vmatprep.subr.mxu0 0.0
      %v635 = vand.u32 %v353, 4294901760
      %636 = vmatpush2.msra.mxu0 %v635
      %637 = vmatprep.subr.mxu0 0.0
      %v638 = vand.u32 %v352, 4294901760
      %639 = vmatpush2.msra.mxu0 %v638
      %640 = vmatprep.subr.mxu0 0.0
      %v641 = vand.u32 %v351, 4294901760
      %642 = vmatpush2.msra.mxu0 %v641
      %643 = vmatprep.subr.mxu0 0.0
      %v644 = vand.u32 %v350, 4294901760
      %645 = vmatpush2.msra.mxu0 %v644
      %646 = vmatprep.subr.mxu0 0.0
      %v647 = vand.u32 %v349, 4294901760
      %648 = vmatpush2.msra.mxu0 %v647
      %649 = vmatprep.subr.mxu0 0.0
      %v650 = vand.u32 %v348, 4294901760
      %651 = vmatpush2.msra.mxu0 %v650
      %v652 = vand.u32 %v540, 4294901760
      %v653 = vsub.f32 %v540, %v652
      %v654 = vand.u32 %v653, 4294901760
      %v655 = vsub.f32 %v653, %v654
      %v656 = vand.u32 %v655, 4294901760
      %657 = vmatprep.mubr.f32.mxu0 %v656
      %v658 = vand.u32 %v508, 4294901760
      %v659 = vsub.f32 %v508, %v658
      %v660 = vand.u32 %v659, 4294901760
      %v661 = vsub.f32 %v659, %v660
      %v662 = vand.u32 %v661, 4294901760
      %663 = vmatmul.mubr.f32.gmra.mxu0 %v662
      %v664 = vpop.f32.mrf.mxu0
      %v665 = vadd.f32 0.0, %v664
      %v666 = vpop.f32.mrf.mxu0
      %667 = vdwg.mxu0
      %668 = vmatprep.subr.mxu0 0.0
      %v669 = vand.u32 %v347, 4294901760
      %v670 = vsub.f32 %v347, %v669
      %v671 = vand.u32 %v670, 4294901760
      %v672 = vsub.f32 %v670, %v671
      %v673 = vand.u32 %v672, 4294901760
      %674 = vmatpush1.msra.mxu0 %v673
      %675 = vmatprep.subr.mxu0 0.0
      %v676 = vand.u32 %v346, 4294901760
      %v677 = vsub.f32 %v346, %v676
      %v678 = vand.u32 %v677, 4294901760
      %v679 = vsub.f32 %v677, %v678
      %v680 = vand.u32 %v679, 4294901760
      %681 = vmatpush1.msra.mxu0 %v680
      %682 = vmatprep.subr.mxu0 0.0
      %v683 = vand.u32 %v345, 4294901760
      %v684 = vsub.f32 %v345, %v683
      %v685 = vand.u32 %v684, 4294901760
      %v686 = vsub.f32 %v684, %v685
      %v687 = vand.u32 %v686, 4294901760
      %688 = vmatpush1.msra.mxu0 %v687
      %689 = vmatprep.subr.mxu0 0.0
      %v690 = vand.u32 %v344, 4294901760
      %v691 = vsub.f32 %v344, %v690
      %v692 = vand.u32 %v691, 4294901760
      %v693 = vsub.f32 %v691, %v692
      %v694 = vand.u32 %v693, 4294901760
      %695 = vmatpush1.msra.mxu0 %v694
      %696 = vmatprep.subr.mxu0 0.0
      %v697 = vand.u32 %v343, 4294901760
      %v698 = vsub.f32 %v343, %v697
      %v699 = vand.u32 %v698, 4294901760
      %v700 = vsub.f32 %v698, %v699
      %v701 = vand.u32 %v700, 4294901760
      %702 = vmatpush1.msra.mxu0 %v701
      %703 = vmatprep.subr.mxu0 0.0
      %v704 = vand.u32 %v342, 4294901760
      %v705 = vsub.f32 %v342, %v704
      %v706 = vand.u32 %v705, 4294901760
      %v707 = vsub.f32 %v705, %v706
      %v708 = vand.u32 %v707, 4294901760
      %709 = vmatpush1.msra.mxu0 %v708
      %710 = vmatprep.subr.mxu0 0.0
      %v711 = vand.u32 %v341, 4294901760
      %v712 = vsub.f32 %v341, %v711
      %v713 = vand.u32 %v712, 4294901760
      %v714 = vsub.f32 %v712, %v713
      %v715 = vand.u32 %v714, 4294901760
      %716 = vmatpush1.msra.mxu0 %v715
      %717 = vmatprep.subr.mxu0 0.0
      %v718 = vand.u32 %v340, 4294901760
      %v719 = vsub.f32 %v340, %v718
      %v720 = vand.u32 %v719, 4294901760
      %v721 = vsub.f32 %v719, %v720
      %v722 = vand.u32 %v721, 4294901760
      %723 = vmatpush1.msra.mxu0 %v722
      %724 = vmatprep.subr.mxu0 0.0
      %v725 = vand.u32 %v339, 4294901760
      %v726 = vsub.f32 %v339, %v725
      %v727 = vand.u32 %v726, 4294901760
      %v728 = vsub.f32 %v726, %v727
      %v729 = vand.u32 %v728, 4294901760
      %730 = vmatpush1.msra.mxu0 %v729
      %731 = vmatprep.subr.mxu0 0.0
      %v732 = vand.u32 %v338, 4294901760
      %v733 = vsub.f32 %v338, %v732
      %v734 = vand.u32 %v733, 4294901760
      %v735 = vsub.f32 %v733, %v734
      %v736 = vand.u32 %v735, 4294901760
      %737 = vmatpush1.msra.mxu0 %v736
      %738 = vmatprep.subr.mxu0 0.0
      %v739 = vand.u32 %v337, 4294901760
      %v740 = vsub.f32 %v337, %v739
      %v741 = vand.u32 %v740, 4294901760
      %v742 = vsub.f32 %v740, %v741
      %v743 = vand.u32 %v742, 4294901760
      %744 = vmatpush1.msra.mxu0 %v743
      %745 = vmatprep.subr.mxu0 0.0
      %v746 = vand.u32 %v336, 4294901760
      %v747 = vsub.f32 %v336, %v746
      %v748 = vand.u32 %v747, 4294901760
      %v749 = vsub.f32 %v747, %v748
      %v750 = vand.u32 %v749, 4294901760
      %751 = vmatpush1.msra.mxu0 %v750
      %752 = vmatprep.subr.mxu0 0.0
      %v753 = vand.u32 %v335, 4294901760
      %v754 = vsub.f32 %v335, %v753
      %v755 = vand.u32 %v754, 4294901760
      %v756 = vsub.f32 %v754, %v755
      %v757 = vand.u32 %v756, 4294901760
      %758 = vmatpush1.msra.mxu0 %v757
      %759 = vmatprep.subr.mxu0 0.0
      %v760 = vand.u32 %v334, 4294901760
      %v761 = vsub.f32 %v334, %v760
      %v762 = vand.u32 %v761, 4294901760
      %v763 = vsub.f32 %v761, %v762
      %v764 = vand.u32 %v763, 4294901760
      %765 = vmatpush1.msra.mxu0 %v764
      %766 = vmatprep.subr.mxu0 0.0
      %v767 = vand.u32 %v333, 4294901760
      %v768 = vsub.f32 %v333, %v767
      %v769 = vand.u32 %v768, 4294901760
      %v770 = vsub.f32 %v768, %v769
      %v771 = vand.u32 %v770, 4294901760
      %772 = vmatpush1.msra.mxu0 %v771
      %773 = vmatprep.subr.mxu0 0.0
      %v774 = vand.u32 %v332, 4294901760
      %v775 = vsub.f32 %v332, %v774
      %v776 = vand.u32 %v775, 4294901760
      %v777 = vsub.f32 %v775, %v776
      %v778 = vand.u32 %v777, 4294901760
      %779 = vmatpush1.msra.mxu0 %v778
      %780 = vmatprep.subr.mxu0 0.0
      %v781 = vand.u32 %v363, 4294901760
      %v782 = vsub.f32 %v363, %v781
      %v783 = vand.u32 %v782, 4294901760
      %v784 = vsub.f32 %v782, %v783
      %v785 = vand.u32 %v784, 4294901760
      %786 = vmatpush2.msra.mxu0 %v785
      %787 = vmatprep.subr.mxu0 0.0
      %v788 = vand.u32 %v362, 4294901760
      %v789 = vsub.f32 %v362, %v788
      %v790 = vand.u32 %v789, 4294901760
      %v791 = vsub.f32 %v789, %v790
      %v792 = vand.u32 %v791, 4294901760
      %793 = vmatpush2.msra.mxu0 %v792
      %794 = vmatprep.subr.mxu0 0.0
      %v795 = vand.u32 %v361, 4294901760
      %v796 = vsub.f32 %v361, %v795
      %v797 = vand.u32 %v796, 4294901760
      %v798 = vsub.f32 %v796, %v797
      %v799 = vand.u32 %v798, 4294901760
      %800 = vmatpush2.msra.mxu0 %v799
      %801 = vmatprep.subr.mxu0 0.0
      %v802 = vand.u32 %v360, 4294901760
      %v803 = vsub.f32 %v360, %v802
      %v804 = vand.u32 %v803, 4294901760
      %v805 = vsub.f32 %v803, %v804
      %v806 = vand.u32 %v805, 4294901760
      %807 = vmatpush2.msra.mxu0 %v806
      %808 = vmatprep.subr.mxu0 0.0
      %v809 = vand.u32 %v359, 4294901760
      %v810 = vsub.f32 %v359, %v809
      %v811 = vand.u32 %v810, 4294901760
      %v812 = vsub.f32 %v810, %v811
      %v813 = vand.u32 %v812, 4294901760
      %814 = vmatpush2.msra.mxu0 %v813
      %815 = vmatprep.subr.mxu0 0.0
      %v816 = vand.u32 %v358, 4294901760
      %v817 = vsub.f32 %v358, %v816
      %v818 = vand.u32 %v817, 4294901760
      %v819 = vsub.f32 %v817, %v818
      %v820 = vand.u32 %v819, 4294901760
      %821 = vmatpush2.msra.mxu0 %v820
      %822 = vmatprep.subr.mxu0 0.0
      %v823 = vand.u32 %v357, 4294901760
      %v824 = vsub.f32 %v357, %v823
      %v825 = vand.u32 %v824, 4294901760
      %v826 = vsub.f32 %v824, %v825
      %v827 = vand.u32 %v826, 4294901760
      %828 = vmatpush2.msra.mxu0 %v827
      %829 = vmatprep.subr.mxu0 0.0
      %v830 = vand.u32 %v356, 4294901760
      %v831 = vsub.f32 %v356, %v830
      %v832 = vand.u32 %v831, 4294901760
      %v833 = vsub.f32 %v831, %v832
      %v834 = vand.u32 %v833, 4294901760
      %835 = vmatpush2.msra.mxu0 %v834
      %836 = vmatprep.subr.mxu0 0.0
      %v837 = vand.u32 %v355, 4294901760
      %v838 = vsub.f32 %v355, %v837
      %v839 = vand.u32 %v838, 4294901760
      %v840 = vsub.f32 %v838, %v839
      %v841 = vand.u32 %v840, 4294901760
      %842 = vmatpush2.msra.mxu0 %v841
      %843 = vmatprep.subr.mxu0 0.0
      %v844 = vand.u32 %v354, 4294901760
      %v845 = vsub.f32 %v354, %v844
      %v846 = vand.u32 %v845, 4294901760
      %v847 = vsub.f32 %v845, %v846
      %v848 = vand.u32 %v847, 4294901760
      %849 = vmatpush2.msra.mxu0 %v848
      %850 = vmatprep.subr.mxu0 0.0
      %v851 = vand.u32 %v353, 4294901760
      %v852 = vsub.f32 %v353, %v851
      %v853 = vand.u32 %v852, 4294901760
      %v854 = vsub.f32 %v852, %v853
      %v855 = vand.u32 %v854, 4294901760
      %856 = vmatpush2.msra.mxu0 %v855
      %857 = vmatprep.subr.mxu0 0.0
      %v858 = vand.u32 %v352, 4294901760
      %v859 = vsub.f32 %v352, %v858
      %v860 = vand.u32 %v859, 4294901760
      %v861 = vsub.f32 %v859, %v860
      %v862 = vand.u32 %v861, 4294901760
      %863 = vmatpush2.msra.mxu0 %v862
      %864 = vmatprep.subr.mxu0 0.0
      %v865 = vand.u32 %v351, 4294901760
      %v866 = vsub.f32 %v351, %v865
      %v867 = vand.u32 %v866, 4294901760
      %v868 = vsub.f32 %v866, %v867
      %v869 = vand.u32 %v868, 4294901760
      %870 = vmatpush2.msra.mxu0 %v869
      %871 = vmatprep.subr.mxu0 0.0
      %v872 = vand.u32 %v350, 4294901760
      %v873 = vsub.f32 %v350, %v872
      %v874 = vand.u32 %v873, 4294901760
      %v875 = vsub.f32 %v873, %v874
      %v876 = vand.u32 %v875, 4294901760
      %877 = vmatpush2.msra.mxu0 %v876
      %878 = vmatprep.subr.mxu0 0.0
      %v879 = vand.u32 %v349, 4294901760
      %v880 = vsub.f32 %v349, %v879
      %v881 = vand.u32 %v880, 4294901760
      %v882 = vsub.f32 %v880, %v881
      %v883 = vand.u32 %v882, 4294901760
      %884 = vmatpush2.msra.mxu0 %v883
      %885 = vmatprep.subr.mxu0 0.0
      %v886 = vand.u32 %v348, 4294901760
      %v887 = vsub.f32 %v348, %v886
      %v888 = vand.u32 %v887, 4294901760
      %v889 = vsub.f32 %v887, %v888
      %v890 = vand.u32 %v889, 4294901760
      %891 = vmatpush2.msra.mxu0 %v890
      %v892 = vand.u32 %v540, 4294901760
      %893 = vmatprep.mubr.f32.mxu0 %v892
      %v894 = vand.u32 %v508, 4294901760
      %895 = vmatmul.mubr.f32.gmra.mxu0 %v894
      %v896 = vpop.f32.mrf.mxu0
      %v897 = vadd.f32 %v665, %v896
      %v898 = vpop.f32.mrf.mxu0
      %899 = vdwg.mxu0
      %900 = vmatprep.subr.mxu0 0.0
      %v901 = vand.u32 %v347, 4294901760
      %v902 = vsub.f32 %v347, %v901
      %903 = vmatpush1.msra.mxu0 %v902
      %904 = vmatprep.subr.mxu0 0.0
      %v905 = vand.u32 %v346, 4294901760
      %v906 = vsub.f32 %v346, %v905
      %907 = vmatpush1.msra.mxu0 %v906
      %908 = vmatprep.subr.mxu0 0.0
      %v909 = vand.u32 %v345, 4294901760
      %v910 = vsub.f32 %v345, %v909
      %911 = vmatpush1.msra.mxu0 %v910
      %912 = vmatprep.subr.mxu0 0.0
      %v913 = vand.u32 %v344, 4294901760
      %v914 = vsub.f32 %v344, %v913
      %915 = vmatpush1.msra.mxu0 %v914
      %916 = vmatprep.subr.mxu0 0.0
      %v917 = vand.u32 %v343, 4294901760
      %v918 = vsub.f32 %v343, %v917
      %919 = vmatpush1.msra.mxu0 %v918
      %920 = vmatprep.subr.mxu0 0.0
      %v921 = vand.u32 %v342, 4294901760
      %v922 = vsub.f32 %v342, %v921
      %923 = vmatpush1.msra.mxu0 %v922
      %924 = vmatprep.subr.mxu0 0.0
      %v925 = vand.u32 %v341, 4294901760
      %v926 = vsub.f32 %v341, %v925
      %927 = vmatpush1.msra.mxu0 %v926
      %928 = vmatprep.subr.mxu0 0.0
      %v929 = vand.u32 %v340, 4294901760
      %v930 = vsub.f32 %v340, %v929
      %931 = vmatpush1.msra.mxu0 %v930
      %932 = vmatprep.subr.mxu0 0.0
      %v933 = vand.u32 %v339, 4294901760
      %v934 = vsub.f32 %v339, %v933
      %935 = vmatpush1.msra.mxu0 %v934
      %936 = vmatprep.subr.mxu0 0.0
      %v937 = vand.u32 %v338, 4294901760
      %v938 = vsub.f32 %v338, %v937
      %939 = vmatpush1.msra.mxu0 %v938
      %940 = vmatprep.subr.mxu0 0.0
      %v941 = vand.u32 %v337, 4294901760
      %v942 = vsub.f32 %v337, %v941
      %943 = vmatpush1.msra.mxu0 %v942
      %944 = vmatprep.subr.mxu0 0.0
      %v945 = vand.u32 %v336, 4294901760
      %v946 = vsub.f32 %v336, %v945
      %947 = vmatpush1.msra.mxu0 %v946
      %948 = vmatprep.subr.mxu0 0.0
      %v949 = vand.u32 %v335, 4294901760
      %v950 = vsub.f32 %v335, %v949
      %951 = vmatpush1.msra.mxu0 %v950
      %952 = vmatprep.subr.mxu0 0.0
      %v953 = vand.u32 %v334, 4294901760
      %v954 = vsub.f32 %v334, %v953
      %955 = vmatpush1.msra.mxu0 %v954
      %956 = vmatprep.subr.mxu0 0.0
      %v957 = vand.u32 %v333, 4294901760
      %v958 = vsub.f32 %v333, %v957
      %959 = vmatpush1.msra.mxu0 %v958
      %960 = vmatprep.subr.mxu0 0.0
      %v961 = vand.u32 %v332, 4294901760
      %v962 = vsub.f32 %v332, %v961
      %963 = vmatpush1.msra.mxu0 %v962
      %964 = vmatprep.subr.mxu0 0.0
      %v965 = vand.u32 %v363, 4294901760
      %v966 = vsub.f32 %v363, %v965
      %967 = vmatpush2.msra.mxu0 %v966
      %968 = vmatprep.subr.mxu0 0.0
      %v969 = vand.u32 %v362, 4294901760
      %v970 = vsub.f32 %v362, %v969
      %971 = vmatpush2.msra.mxu0 %v970
      %972 = vmatprep.subr.mxu0 0.0
      %v973 = vand.u32 %v361, 4294901760
      %v974 = vsub.f32 %v361, %v973
      %975 = vmatpush2.msra.mxu0 %v974
      %976 = vmatprep.subr.mxu0 0.0
      %v977 = vand.u32 %v360, 4294901760
      %v978 = vsub.f32 %v360, %v977
      %979 = vmatpush2.msra.mxu0 %v978
      %980 = vmatprep.subr.mxu0 0.0
      %v981 = vand.u32 %v359, 4294901760
      %v982 = vsub.f32 %v359, %v981
      %983 = vmatpush2.msra.mxu0 %v982
      %984 = vmatprep.subr.mxu0 0.0
      %v985 = vand.u32 %v358, 4294901760
      %v986 = vsub.f32 %v358, %v985
      %987 = vmatpush2.msra.mxu0 %v986
      %988 = vmatprep.subr.mxu0 0.0
      %v989 = vand.u32 %v357, 4294901760
      %v990 = vsub.f32 %v357, %v989
      %991 = vmatpush2.msra.mxu0 %v990
      %992 = vmatprep.subr.mxu0 0.0
      %v993 = vand.u32 %v356, 4294901760
      %v994 = vsub.f32 %v356, %v993
      %995 = vmatpush2.msra.mxu0 %v994
      %996 = vmatprep.subr.mxu0 0.0
      %v997 = vand.u32 %v355, 4294901760
      %v998 = vsub.f32 %v355, %v997
      %999 = vmatpush2.msra.mxu0 %v998
      %1000 = vmatprep.subr.mxu0 0.0
      %v1001 = vand.u32 %v354, 4294901760
      %v1002 = vsub.f32 %v354, %v1001
      %1003 = vmatpush2.msra.mxu0 %v1002
      %1004 = vmatprep.subr.mxu0 0.0
      %v1005 = vand.u32 %v353, 4294901760
      %v1006 = vsub.f32 %v353, %v1005
      %1007 = vmatpush2.msra.mxu0 %v1006
      %1008 = vmatprep.subr.mxu0 0.0
      %v1009 = vand.u32 %v352, 4294901760
      %v1010 = vsub.f32 %v352, %v1009
      %1011 = vmatpush2.msra.mxu0 %v1010
      %1012 = vmatprep.subr.mxu0 0.0
      %v1013 = vand.u32 %v351, 4294901760
      %v1014 = vsub.f32 %v351, %v1013
      %1015 = vmatpush2.msra.mxu0 %v1014
      %1016 = vmatprep.subr.mxu0 0.0
      %v1017 = vand.u32 %v350, 4294901760
      %v1018 = vsub.f32 %v350, %v1017
      %1019 = vmatpush2.msra.mxu0 %v1018
      %1020 = vmatprep.subr.mxu0 0.0
      %v1021 = vand.u32 %v349, 4294901760
      %v1022 = vsub.f32 %v349, %v1021
      %1023 = vmatpush2.msra.mxu0 %v1022
      %1024 = vmatprep.subr.mxu0 0.0
      %v1025 = vand.u32 %v348, 4294901760
      %v1026 = vsub.f32 %v348, %v1025
      %1027 = vmatpush2.msra.mxu0 %v1026
      %v1028 = vand.u32 %v540, 4294901760
      %v1029 = vsub.f32 %v540, %v1028
      %1030 = vmatprep.mubr.f32.mxu0 %v1029
      %v1031 = vand.u32 %v508, 4294901760
      %v1032 = vsub.f32 %v508, %v1031
      %1033 = vmatmul.mubr.f32.gmra.mxu0 %v1032
      %v1034 = vpop.f32.mrf.mxu0
      %v1035 = vadd.f32 %v897, %v1034
      %v1036 = vpop.f32.mrf.mxu0
      %1037 = vdwg.mxu0
      %1038 = vmatprep.subr.mxu0 0.0
      %v1039 = vand.u32 %v347, 4294901760
      %1040 = vmatpush1.msra.mxu0 %v1039
      %1041 = vmatprep.subr.mxu0 0.0
      %v1042 = vand.u32 %v346, 4294901760
      %1043 = vmatpush1.msra.mxu0 %v1042
      %1044 = vmatprep.subr.mxu0 0.0
      %v1045 = vand.u32 %v345, 4294901760
      %1046 = vmatpush1.msra.mxu0 %v1045
      %1047 = vmatprep.subr.mxu0 0.0
      %v1048 = vand.u32 %v344, 4294901760
      %1049 = vmatpush1.msra.mxu0 %v1048
      %1050 = vmatprep.subr.mxu0 0.0
      %v1051 = vand.u32 %v343, 4294901760
      %1052 = vmatpush1.msra.mxu0 %v1051
      %1053 = vmatprep.subr.mxu0 0.0
      %v1054 = vand.u32 %v342, 4294901760
      %1055 = vmatpush1.msra.mxu0 %v1054
      %1056 = vmatprep.subr.mxu0 0.0
      %v1057 = vand.u32 %v341, 4294901760
      %1058 = vmatpush1.msra.mxu0 %v1057
      %1059 = vmatprep.subr.mxu0 0.0
      %v1060 = vand.u32 %v340, 4294901760
      %1061 = vmatpush1.msra.mxu0 %v1060
      %1062 = vmatprep.subr.mxu0 0.0
      %v1063 = vand.u32 %v339, 4294901760
      %1064 = vmatpush1.msra.mxu0 %v1063
      %1065 = vmatprep.subr.mxu0 0.0
      %v1066 = vand.u32 %v338, 4294901760
      %1067 = vmatpush1.msra.mxu0 %v1066
      %1068 = vmatprep.subr.mxu0 0.0
      %v1069 = vand.u32 %v337, 4294901760
      %1070 = vmatpush1.msra.mxu0 %v1069
      %1071 = vmatprep.subr.mxu0 0.0
      %v1072 = vand.u32 %v336, 4294901760
      %1073 = vmatpush1.msra.mxu0 %v1072
      %1074 = vmatprep.subr.mxu0 0.0
      %v1075 = vand.u32 %v335, 4294901760
      %1076 = vmatpush1.msra.mxu0 %v1075
      %1077 = vmatprep.subr.mxu0 0.0
      %v1078 = vand.u32 %v334, 4294901760
      %1079 = vmatpush1.msra.mxu0 %v1078
      %1080 = vmatprep.subr.mxu0 0.0
      %v1081 = vand.u32 %v333, 4294901760
      %1082 = vmatpush1.msra.mxu0 %v1081
      %1083 = vmatprep.subr.mxu0 0.0
      %v1084 = vand.u32 %v332, 4294901760
      %1085 = vmatpush1.msra.mxu0 %v1084
      %1086 = vmatprep.subr.mxu0 0.0
      %v1087 = vand.u32 %v363, 4294901760
      %1088 = vmatpush2.msra.mxu0 %v1087
      %1089 = vmatprep.subr.mxu0 0.0
      %v1090 = vand.u32 %v362, 4294901760
      %1091 = vmatpush2.msra.mxu0 %v1090
      %1092 = vmatprep.subr.mxu0 0.0
      %v1093 = vand.u32 %v361, 4294901760
      %1094 = vmatpush2.msra.mxu0 %v1093
      %1095 = vmatprep.subr.mxu0 0.0
      %v1096 = vand.u32 %v360, 4294901760
      %1097 = vmatpush2.msra.mxu0 %v1096
      %1098 = vmatprep.subr.mxu0 0.0
      %v1099 = vand.u32 %v359, 4294901760
      %1100 = vmatpush2.msra.mxu0 %v1099
      %1101 = vmatprep.subr.mxu0 0.0
      %v1102 = vand.u32 %v358, 4294901760
      %1103 = vmatpush2.msra.mxu0 %v1102
      %1104 = vmatprep.subr.mxu0 0.0
      %v1105 = vand.u32 %v357, 4294901760
      %1106 = vmatpush2.msra.mxu0 %v1105
      %1107 = vmatprep.subr.mxu0 0.0
      %v1108 = vand.u32 %v356, 4294901760
      %1109 = vmatpush2.msra.mxu0 %v1108
      %1110 = vmatprep.subr.mxu0 0.0
      %v1111 = vand.u32 %v355, 4294901760
      %1112 = vmatpush2.msra.mxu0 %v1111
      %1113 = vmatprep.subr.mxu0 0.0
      %v1114 = vand.u32 %v354, 4294901760
      %1115 = vmatpush2.msra.mxu0 %v1114
      %1116 = vmatprep.subr.mxu0 0.0
      %v1117 = vand.u32 %v353, 4294901760
      %1118 = vmatpush2.msra.mxu0 %v1117
      %1119 = vmatprep.subr.mxu0 0.0
      %v1120 = vand.u32 %v352, 4294901760
      %1121 = vmatpush2.msra.mxu0 %v1120
      %1122 = vmatprep.subr.mxu0 0.0
      %v1123 = vand.u32 %v351, 4294901760
      %1124 = vmatpush2.msra.mxu0 %v1123
      %1125 = vmatprep.subr.mxu0 0.0
      %v1126 = vand.u32 %v350, 4294901760
      %1127 = vmatpush2.msra.mxu0 %v1126
      %1128 = vmatprep.subr.mxu0 0.0
      %v1129 = vand.u32 %v349, 4294901760
      %1130 = vmatpush2.msra.mxu0 %v1129
      %1131 = vmatprep.subr.mxu0 0.0
      %v1132 = vand.u32 %v348, 4294901760
      %1133 = vmatpush2.msra.mxu0 %v1132
      %v1134 = vand.u32 %v540, 4294901760
      %v1135 = vsub.f32 %v540, %v1134
      %v1136 = vand.u32 %v1135, 4294901760
      %1137 = vmatprep.mubr.f32.mxu0 %v1136
      %v1138 = vand.u32 %v508, 4294901760
      %v1139 = vsub.f32 %v508, %v1138
      %v1140 = vand.u32 %v1139, 4294901760
      %1141 = vmatmul.mubr.f32.gmra.mxu0 %v1140
      %v1142 = vpop.f32.mrf.mxu0
      %v1143 = vadd.f32 %v1035, %v1142
      %v1144 = vpop.f32.mrf.mxu0
      %1145 = vdwg.mxu0
      %1146 = vmatprep.subr.mxu0 0.0
      %v1147 = vand.u32 %v347, 4294901760
      %v1148 = vsub.f32 %v347, %v1147
      %v1149 = vand.u32 %v1148, 4294901760
      %1150 = vmatpush1.msra.mxu0 %v1149
      %1151 = vmatprep.subr.mxu0 0.0
      %v1152 = vand.u32 %v346, 4294901760
      %v1153 = vsub.f32 %v346, %v1152
      %v1154 = vand.u32 %v1153, 4294901760
      %1155 = vmatpush1.msra.mxu0 %v1154
      %1156 = vmatprep.subr.mxu0 0.0
      %v1157 = vand.u32 %v345, 4294901760
      %v1158 = vsub.f32 %v345, %v1157
      %v1159 = vand.u32 %v1158, 4294901760
      %1160 = vmatpush1.msra.mxu0 %v1159
      %1161 = vmatprep.subr.mxu0 0.0
      %v1162 = vand.u32 %v344, 4294901760
      %v1163 = vsub.f32 %v344, %v1162
      %v1164 = vand.u32 %v1163, 4294901760
      %1165 = vmatpush1.msra.mxu0 %v1164
      %1166 = vmatprep.subr.mxu0 0.0
      %v1167 = vand.u32 %v343, 4294901760
      %v1168 = vsub.f32 %v343, %v1167
      %v1169 = vand.u32 %v1168, 4294901760
      %1170 = vmatpush1.msra.mxu0 %v1169
      %1171 = vmatprep.subr.mxu0 0.0
      %v1172 = vand.u32 %v342, 4294901760
      %v1173 = vsub.f32 %v342, %v1172
      %v1174 = vand.u32 %v1173, 4294901760
      %1175 = vmatpush1.msra.mxu0 %v1174
      %1176 = vmatprep.subr.mxu0 0.0
      %v1177 = vand.u32 %v341, 4294901760
      %v1178 = vsub.f32 %v341, %v1177
      %v1179 = vand.u32 %v1178, 4294901760
      %1180 = vmatpush1.msra.mxu0 %v1179
      %1181 = vmatprep.subr.mxu0 0.0
      %v1182 = vand.u32 %v340, 4294901760
      %v1183 = vsub.f32 %v340, %v1182
      %v1184 = vand.u32 %v1183, 4294901760
      %1185 = vmatpush1.msra.mxu0 %v1184
      %1186 = vmatprep.subr.mxu0 0.0
      %v1187 = vand.u32 %v339, 4294901760
      %v1188 = vsub.f32 %v339, %v1187
      %v1189 = vand.u32 %v1188, 4294901760
      %1190 = vmatpush1.msra.mxu0 %v1189
      %1191 = vmatprep.subr.mxu0 0.0
      %v1192 = vand.u32 %v338, 4294901760
      %v1193 = vsub.f32 %v338, %v1192
      %v1194 = vand.u32 %v1193, 4294901760
      %1195 = vmatpush1.msra.mxu0 %v1194
      %1196 = vmatprep.subr.mxu0 0.0
      %v1197 = vand.u32 %v337, 4294901760
      %v1198 = vsub.f32 %v337, %v1197
      %v1199 = vand.u32 %v1198, 4294901760
      %1200 = vmatpush1.msra.mxu0 %v1199
      %1201 = vmatprep.subr.mxu0 0.0
      %v1202 = vand.u32 %v336, 4294901760
      %v1203 = vsub.f32 %v336, %v1202
      %v1204 = vand.u32 %v1203, 4294901760
      %1205 = vmatpush1.msra.mxu0 %v1204
      %1206 = vmatprep.subr.mxu0 0.0
      %v1207 = vand.u32 %v335, 4294901760
      %v1208 = vsub.f32 %v335, %v1207
      %v1209 = vand.u32 %v1208, 4294901760
      %1210 = vmatpush1.msra.mxu0 %v1209
      %1211 = vmatprep.subr.mxu0 0.0
      %v1212 = vand.u32 %v334, 4294901760
      %v1213 = vsub.f32 %v334, %v1212
      %v1214 = vand.u32 %v1213, 4294901760
      %1215 = vmatpush1.msra.mxu0 %v1214
      %1216 = vmatprep.subr.mxu0 0.0
      %v1217 = vand.u32 %v333, 4294901760
      %v1218 = vsub.f32 %v333, %v1217
      %v1219 = vand.u32 %v1218, 4294901760
      %1220 = vmatpush1.msra.mxu0 %v1219
      %1221 = vmatprep.subr.mxu0 0.0
      %v1222 = vand.u32 %v332, 4294901760
      %v1223 = vsub.f32 %v332, %v1222
      %v1224 = vand.u32 %v1223, 4294901760
      %1225 = vmatpush1.msra.mxu0 %v1224
      %1226 = vmatprep.subr.mxu0 0.0
      %v1227 = vand.u32 %v363, 4294901760
      %v1228 = vsub.f32 %v363, %v1227
      %v1229 = vand.u32 %v1228, 4294901760
      %1230 = vmatpush2.msra.mxu0 %v1229
      %1231 = vmatprep.subr.mxu0 0.0
      %v1232 = vand.u32 %v362, 4294901760
      %v1233 = vsub.f32 %v362, %v1232
      %v1234 = vand.u32 %v1233, 4294901760
      %1235 = vmatpush2.msra.mxu0 %v1234
      %1236 = vmatprep.subr.mxu0 0.0
      %v1237 = vand.u32 %v361, 4294901760
      %v1238 = vsub.f32 %v361, %v1237
      %v1239 = vand.u32 %v1238, 4294901760
      %1240 = vmatpush2.msra.mxu0 %v1239
      %1241 = vmatprep.subr.mxu0 0.0
      %v1242 = vand.u32 %v360, 4294901760
      %v1243 = vsub.f32 %v360, %v1242
      %v1244 = vand.u32 %v1243, 4294901760
      %1245 = vmatpush2.msra.mxu0 %v1244
      %1246 = vmatprep.subr.mxu0 0.0
      %v1247 = vand.u32 %v359, 4294901760
      %v1248 = vsub.f32 %v359, %v1247
      %v1249 = vand.u32 %v1248, 4294901760
      %1250 = vmatpush2.msra.mxu0 %v1249
      %1251 = vmatprep.subr.mxu0 0.0
      %v1252 = vand.u32 %v358, 4294901760
      %v1253 = vsub.f32 %v358, %v1252
      %v1254 = vand.u32 %v1253, 4294901760
      %1255 = vmatpush2.msra.mxu0 %v1254
      %1256 = vmatprep.subr.mxu0 0.0
      %v1257 = vand.u32 %v357, 4294901760
      %v1258 = vsub.f32 %v357, %v1257
      %v1259 = vand.u32 %v1258, 4294901760
      %1260 = vmatpush2.msra.mxu0 %v1259
      %1261 = vmatprep.subr.mxu0 0.0
      %v1262 = vand.u32 %v356, 4294901760
      %v1263 = vsub.f32 %v356, %v1262
      %v1264 = vand.u32 %v1263, 4294901760
      %1265 = vmatpush2.msra.mxu0 %v1264
      %1266 = vmatprep.subr.mxu0 0.0
      %v1267 = vand.u32 %v355, 4294901760
      %v1268 = vsub.f32 %v355, %v1267
      %v1269 = vand.u32 %v1268, 4294901760
      %1270 = vmatpush2.msra.mxu0 %v1269
      %1271 = vmatprep.subr.mxu0 0.0
      %v1272 = vand.u32 %v354, 4294901760
      %v1273 = vsub.f32 %v354, %v1272
      %v1274 = vand.u32 %v1273, 4294901760
      %1275 = vmatpush2.msra.mxu0 %v1274
      %1276 = vmatprep.subr.mxu0 0.0
      %v1277 = vand.u32 %v353, 4294901760
      %v1278 = vsub.f32 %v353, %v1277
      %v1279 = vand.u32 %v1278, 4294901760
      %1280 = vmatpush2.msra.mxu0 %v1279
      %1281 = vmatprep.subr.mxu0 0.0
      %v1282 = vand.u32 %v352, 4294901760
      %v1283 = vsub.f32 %v352, %v1282
      %v1284 = vand.u32 %v1283, 4294901760
      %1285 = vmatpush2.msra.mxu0 %v1284
      %1286 = vmatprep.subr.mxu0 0.0
      %v1287 = vand.u32 %v351, 4294901760
      %v1288 = vsub.f32 %v351, %v1287
      %v1289 = vand.u32 %v1288, 4294901760
      %1290 = vmatpush2.msra.mxu0 %v1289
      %1291 = vmatprep.subr.mxu0 0.0
      %v1292 = vand.u32 %v350, 4294901760
      %v1293 = vsub.f32 %v350, %v1292
      %v1294 = vand.u32 %v1293, 4294901760
      %1295 = vmatpush2.msra.mxu0 %v1294
      %1296 = vmatprep.subr.mxu0 0.0
      %v1297 = vand.u32 %v349, 4294901760
      %v1298 = vsub.f32 %v349, %v1297
      %v1299 = vand.u32 %v1298, 4294901760
      %1300 = vmatpush2.msra.mxu0 %v1299
      %1301 = vmatprep.subr.mxu0 0.0
      %v1302 = vand.u32 %v348, 4294901760
      %v1303 = vsub.f32 %v348, %v1302
      %v1304 = vand.u32 %v1303, 4294901760
      %1305 = vmatpush2.msra.mxu0 %v1304
      %v1306 = vand.u32 %v540, 4294901760
      %1307 = vmatprep.mubr.f32.mxu0 %v1306
      %v1308 = vand.u32 %v508, 4294901760
      %1309 = vmatmul.mubr.f32.gmra.mxu0 %v1308
      %v1310 = vpop.f32.mrf.mxu0
      %v1311 = vadd.f32 %v1143, %v1310
      %v1312 = vpop.f32.mrf.mxu0
      %1313 = vdwg.mxu0
      %1314 = vmatprep.subr.mxu0 0.0
      %v1315 = vand.u32 %v347, 4294901760
      %1316 = vmatpush1.msra.mxu0 %v1315
      %1317 = vmatprep.subr.mxu0 0.0
      %v1318 = vand.u32 %v346, 4294901760
      %1319 = vmatpush1.msra.mxu0 %v1318
      %1320 = vmatprep.subr.mxu0 0.0
      %v1321 = vand.u32 %v345, 4294901760
      %1322 = vmatpush1.msra.mxu0 %v1321
      %1323 = vmatprep.subr.mxu0 0.0
      %v1324 = vand.u32 %v344, 4294901760
      %1325 = vmatpush1.msra.mxu0 %v1324
      %1326 = vmatprep.subr.mxu0 0.0
      %v1327 = vand.u32 %v343, 4294901760
      %1328 = vmatpush1.msra.mxu0 %v1327
      %1329 = vmatprep.subr.mxu0 0.0
      %v1330 = vand.u32 %v342, 4294901760
      %1331 = vmatpush1.msra.mxu0 %v1330
      %1332 = vmatprep.subr.mxu0 0.0
      %v1333 = vand.u32 %v341, 4294901760
      %1334 = vmatpush1.msra.mxu0 %v1333
      %1335 = vmatprep.subr.mxu0 0.0
      %v1336 = vand.u32 %v340, 4294901760
      %1337 = vmatpush1.msra.mxu0 %v1336
      %1338 = vmatprep.subr.mxu0 0.0
      %v1339 = vand.u32 %v339, 4294901760
      %1340 = vmatpush1.msra.mxu0 %v1339
      %1341 = vmatprep.subr.mxu0 0.0
      %v1342 = vand.u32 %v338, 4294901760
      %1343 = vmatpush1.msra.mxu0 %v1342
      %1344 = vmatprep.subr.mxu0 0.0
      %v1345 = vand.u32 %v337, 4294901760
      %1346 = vmatpush1.msra.mxu0 %v1345
      %1347 = vmatprep.subr.mxu0 0.0
      %v1348 = vand.u32 %v336, 4294901760
      %1349 = vmatpush1.msra.mxu0 %v1348
      %1350 = vmatprep.subr.mxu0 0.0
      %v1351 = vand.u32 %v335, 4294901760
      %1352 = vmatpush1.msra.mxu0 %v1351
      %1353 = vmatprep.subr.mxu0 0.0
      %v1354 = vand.u32 %v334, 4294901760
      %1355 = vmatpush1.msra.mxu0 %v1354
      %1356 = vmatprep.subr.mxu0 0.0
      %v1357 = vand.u32 %v333, 4294901760
      %1358 = vmatpush1.msra.mxu0 %v1357
      %1359 = vmatprep.subr.mxu0 0.0
      %v1360 = vand.u32 %v332, 4294901760
      %1361 = vmatpush1.msra.mxu0 %v1360
      %1362 = vmatprep.subr.mxu0 0.0
      %v1363 = vand.u32 %v363, 4294901760
      %1364 = vmatpush2.msra.mxu0 %v1363
      %1365 = vmatprep.subr.mxu0 0.0
      %v1366 = vand.u32 %v362, 4294901760
      %1367 = vmatpush2.msra.mxu0 %v1366
      %1368 = vmatprep.subr.mxu0 0.0
      %v1369 = vand.u32 %v361, 4294901760
      %1370 = vmatpush2.msra.mxu0 %v1369
      %1371 = vmatprep.subr.mxu0 0.0
      %v1372 = vand.u32 %v360, 4294901760
      %1373 = vmatpush2.msra.mxu0 %v1372
      %1374 = vmatprep.subr.mxu0 0.0
      %v1375 = vand.u32 %v359, 4294901760
      %1376 = vmatpush2.msra.mxu0 %v1375
      %1377 = vmatprep.subr.mxu0 0.0
      %v1378 = vand.u32 %v358, 4294901760
      %1379 = vmatpush2.msra.mxu0 %v1378
      %1380 = vmatprep.subr.mxu0 0.0
      %v1381 = vand.u32 %v357, 4294901760
      %1382 = vmatpush2.msra.mxu0 %v1381
      %1383 = vmatprep.subr.mxu0 0.0
      %v1384 = vand.u32 %v356, 4294901760
      %1385 = vmatpush2.msra.mxu0 %v1384
      %1386 = vmatprep.subr.mxu0 0.0
      %v1387 = vand.u32 %v355, 4294901760
      %1388 = vmatpush2.msra.mxu0 %v1387
      %1389 = vmatprep.subr.mxu0 0.0
      %v1390 = vand.u32 %v354, 4294901760
      %1391 = vmatpush2.msra.mxu0 %v1390
      %1392 = vmatprep.subr.mxu0 0.0
      %v1393 = vand.u32 %v353, 4294901760
      %1394 = vmatpush2.msra.mxu0 %v1393
      %1395 = vmatprep.subr.mxu0 0.0
      %v1396 = vand.u32 %v352, 4294901760
      %1397 = vmatpush2.msra.mxu0 %v1396
      %1398 = vmatprep.subr.mxu0 0.0
      %v1399 = vand.u32 %v351, 4294901760
      %1400 = vmatpush2.msra.mxu0 %v1399
      %1401 = vmatprep.subr.mxu0 0.0
      %v1402 = vand.u32 %v350, 4294901760
      %1403 = vmatpush2.msra.mxu0 %v1402
      %1404 = vmatprep.subr.mxu0 0.0
      %v1405 = vand.u32 %v349, 4294901760
      %1406 = vmatpush2.msra.mxu0 %v1405
      %1407 = vmatprep.subr.mxu0 0.0
      %v1408 = vand.u32 %v348, 4294901760
      %1409 = vmatpush2.msra.mxu0 %v1408
      %v1410 = vand.u32 %v540, 4294901760
      %1411 = vmatprep.mubr.f32.mxu0 %v1410
      %v1412 = vand.u32 %v508, 4294901760
      %1413 = vmatmul.mubr.f32.gmra.mxu0 %v1412
      %v1414 = vpop.f32.mrf.mxu0
      %v1415 = vadd.f32 %v1311, %v1414
      %v1416 = vpop.f32.mrf.mxu0
      %1417 = vdwg.mxu0
      %1418 = vset.pattern.permute.xlu0 0
      %1419 = vperm.xlu0 %1418, %v267
      %v1420 = vpop.permute.xlu0 %1419
      %1422 = vset.pattern.permute.xlu0 0
      %1423 = vperm.xlu0 %1422, %v268
      %v1424 = vpop.permute.xlu0 %1423
      %1426 = vset.pattern.permute.xlu0 0
      %1427 = vperm.xlu0 %1426, %v269
      %v1428 = vpop.permute.xlu0 %1427
      %1430 = vset.pattern.permute.xlu0 0
      %1431 = vperm.xlu0 %1430, %v270
      %v1432 = vpop.permute.xlu0 %1431
      %1434 = vset.pattern.permute.xlu0 0
      %1435 = vperm.xlu0 %1434, %v271
      %v1436 = vpop.permute.xlu0 %1435
      %1438 = vset.pattern.permute.xlu0 0
      %1439 = vperm.xlu0 %1438, %v272
      %v1440 = vpop.permute.xlu0 %1439
      %1442 = vset.pattern.permute.xlu0 0
      %1443 = vperm.xlu0 %1442, %v273
      %v1444 = vpop.permute.xlu0 %1443
      %1446 = vset.pattern.permute.xlu0 0
      %1447 = vperm.xlu0 %1446, %v274
      %v1448 = vpop.permute.xlu0 %1447
      %1450 = vset.pattern.permute.xlu0 0
      %1451 = vperm.xlu0 %1450, %v275
      %v1452 = vpop.permute.xlu0 %1451
      %1454 = vset.pattern.permute.xlu0 0
      %1455 = vperm.xlu0 %1454, %v276
      %v1456 = vpop.permute.xlu0 %1455
      %1458 = vset.pattern.permute.xlu0 0
      %1459 = vperm.xlu0 %1458, %v277
      %v1460 = vpop.permute.xlu0 %1459
      %1462 = vset.pattern.permute.xlu0 0
      %1463 = vperm.xlu0 %1462, %v278
      %v1464 = vpop.permute.xlu0 %1463
      %1466 = vset.pattern.permute.xlu0 0
      %1467 = vperm.xlu0 %1466, %v279
      %v1468 = vpop.permute.xlu0 %1467
      %1470 = vset.pattern.permute.xlu0 0
      %1471 = vperm.xlu0 %1470, %v280
      %v1472 = vpop.permute.xlu0 %1471
      %1474 = vset.pattern.permute.xlu0 0
      %1475 = vperm.xlu0 %1474, %v281
      %v1476 = vpop.permute.xlu0 %1475
      %1478 = vset.pattern.permute.xlu0 0
      %1479 = vperm.xlu0 %1478, %v282
      %v1480 = vpop.permute.xlu0 %1479
      %1482 = vset.pattern.permute.xlu0 0
      %1483 = vperm.xlu0 %1482, %v283
      %v1484 = vpop.permute.xlu0 %1483
      %1486 = vset.pattern.permute.xlu0 0
      %1487 = vperm.xlu0 %1486, %v284
      %v1488 = vpop.permute.xlu0 %1487
      %1490 = vset.pattern.permute.xlu0 0
      %1491 = vperm.xlu0 %1490, %v285
      %v1492 = vpop.permute.xlu0 %1491
      %1494 = vset.pattern.permute.xlu0 0
      %1495 = vperm.xlu0 %1494, %v286
      %v1496 = vpop.permute.xlu0 %1495
      %1498 = vset.pattern.permute.xlu0 0
      %1499 = vperm.xlu0 %1498, %v287
      %v1500 = vpop.permute.xlu0 %1499
      %1502 = vset.pattern.permute.xlu0 0
      %1503 = vperm.xlu0 %1502, %v288
      %v1504 = vpop.permute.xlu0 %1503
      %1506 = vset.pattern.permute.xlu0 0
      %1507 = vperm.xlu0 %1506, %v289
      %v1508 = vpop.permute.xlu0 %1507
      %1510 = vset.pattern.permute.xlu0 0
      %1511 = vperm.xlu0 %1510, %v290
      %v1512 = vpop.permute.xlu0 %1511
      %1514 = vset.pattern.permute.xlu0 0
      %1515 = vperm.xlu0 %1514, %v291
      %v1516 = vpop.permute.xlu0 %1515
      %1518 = vset.pattern.permute.xlu0 0
      %1519 = vperm.xlu0 %1518, %v292
      %v1520 = vpop.permute.xlu0 %1519
      %1522 = vset.pattern.permute.xlu0 0
      %1523 = vperm.xlu0 %1522, %v293
      %v1524 = vpop.permute.xlu0 %1523
      %1526 = vset.pattern.permute.xlu0 0
      %1527 = vperm.xlu0 %1526, %v294
      %v1528 = vpop.permute.xlu0 %1527
      %1530 = vset.pattern.permute.xlu0 0
      %1531 = vperm.xlu0 %1530, %v295
      %v1532 = vpop.permute.xlu0 %1531
      %1534 = vset.pattern.permute.xlu0 0
      %1535 = vperm.xlu0 %1534, %v296
      %v1536 = vpop.permute.xlu0 %1535
      %1538 = vset.pattern.permute.xlu0 0
      %1539 = vperm.xlu0 %1538, %v297
      %v1540 = vpop.permute.xlu0 %1539
      %1542 = vset.pattern.permute.xlu0 0
      %1543 = vperm.xlu0 %1542, %v298
      %v1544 = vpop.permute.xlu0 %1543
      %v1546 = vsel %vm235, %v1420, -inf
      %v1547 = vsel %vm236, %v1424, -inf
      %v1548 = vsel %vm237, %v1428, -inf
      %v1549 = vsel %vm238, %v1432, -inf
      %v1550 = vsel %vm239, %v1436, -inf
      %v1551 = vsel %vm240, %v1440, -inf
      %v1552 = vsel %vm241, %v1444, -inf
      %v1553 = vsel %vm242, %v1448, -inf
      %v1554 = vsel %vm243, %v1452, -inf
      %v1555 = vsel %vm244, %v1456, -inf
      %v1556 = vsel %vm245, %v1460, -inf
      %v1557 = vsel %vm246, %v1464, -inf
      %v1558 = vsel %vm247, %v1468, -inf
      %v1559 = vsel %vm248, %v1472, -inf
      %v1560 = vsel %vm249, %v1476, -inf
      %v1561 = vsel %vm250, %v1480, -inf
      %v1562 = vsel %vm251, %v1484, -inf
      %v1563 = vsel %vm252, %v1488, -inf
      %v1564 = vsel %vm253, %v1492, -inf
      %v1565 = vsel %vm254, %v1496, -inf
      %v1566 = vsel %vm255, %v1500, -inf
      %v1567 = vsel %vm256, %v1504, -inf
      %v1568 = vsel %vm257, %v1508, -inf
      %v1569 = vsel %vm258, %v1512, -inf
      %v1570 = vsel %vm259, %v1516, -inf
      %v1571 = vsel %vm260, %v1520, -inf
      %v1572 = vsel %vm261, %v1524, -inf
      %v1573 = vsel %vm262, %v1528, -inf
      %v1574 = vsel %vm263, %v1532, -inf
      %v1575 = vsel %vm264, %v1536, -inf
      %v1576 = vsel %vm265, %v1540, -inf
      %v1577 = vsel %vm266, %v1544, -inf
      %v1578 = vmax.f32 %v1546, %v1550
      %v1579 = vmax.f32 %v1547, %v1551
      %v1580 = vmax.f32 %v1548, %v1552
      %v1581 = vmax.f32 %v1549, %v1553
      %v1582 = vmax.f32 %v1578, %v1554
      %v1583 = vmax.f32 %v1579, %v1555
      %v1584 = vmax.f32 %v1580, %v1556
      %v1585 = vmax.f32 %v1581, %v1557
      %v1586 = vmax.f32 %v1582, %v1558
      %v1587 = vmax.f32 %v1583, %v1559
      %v1588 = vmax.f32 %v1584, %v1560
      %v1589 = vmax.f32 %v1585, %v1561
      %v1590 = vmax.f32 %v1586, %v1562
      %v1591 = vmax.f32 %v1587, %v1563
      %v1592 = vmax.f32 %v1588, %v1564
      %v1593 = vmax.f32 %v1589, %v1565
      %v1594 = vmax.f32 %v1590, %v1566
      %v1595 = vmax.f32 %v1591, %v1567
      %v1596 = vmax.f32 %v1592, %v1568
      %v1597 = vmax.f32 %v1593, %v1569
      %v1598 = vmax.f32 %v1594, %v1570
      %v1599 = vmax.f32 %v1595, %v1571
      %v1600 = vmax.f32 %v1596, %v1572
      %v1601 = vmax.f32 %v1597, %v1573
      %v1602 = vmax.f32 %v1598, %v1574
      %v1603 = vmax.f32 %v1599, %v1575
      %v1604 = vmax.f32 %v1600, %v1576
      %v1605 = vmax.f32 %v1601, %v1577
      %v1606 = vmax.f32 %v1602, %v1603
      %v1607 = vmax.f32 %v1604, %v1605
      %v1608 = vmax.f32 %v1606, %v1607
      %v1609 = vrot.slane %v1608, 4
      %v1610 = vmax.f32 %v1608, %v1609
      %v1611 = vrot.slane %v1610, 2
      %v1612 = vmax.f32 %v1610, %v1611
      %v1613 = vrot.slane %v1612, 1
      %v1614 = vmax.f32 %v1612, %v1613
      %1615 = vset.pattern.permute.xlu0 1
      %1616 = vperm.xlu0 %1615, %v267
      %v1617 = vpop.permute.xlu0 %1616
      %1619 = vset.pattern.permute.xlu0 1
      %1620 = vperm.xlu0 %1619, %v268
      %v1621 = vpop.permute.xlu0 %1620
      %1623 = vset.pattern.permute.xlu0 1
      %1624 = vperm.xlu0 %1623, %v269
      %v1625 = vpop.permute.xlu0 %1624
      %1627 = vset.pattern.permute.xlu0 1
      %1628 = vperm.xlu0 %1627, %v270
      %v1629 = vpop.permute.xlu0 %1628
      %1631 = vset.pattern.permute.xlu0 1
      %1632 = vperm.xlu0 %1631, %v271
      %v1633 = vpop.permute.xlu0 %1632
      %1635 = vset.pattern.permute.xlu0 1
      %1636 = vperm.xlu0 %1635, %v272
      %v1637 = vpop.permute.xlu0 %1636
      %1639 = vset.pattern.permute.xlu0 1
      %1640 = vperm.xlu0 %1639, %v273
      %v1641 = vpop.permute.xlu0 %1640
      %1643 = vset.pattern.permute.xlu0 1
      %1644 = vperm.xlu0 %1643, %v274
      %v1645 = vpop.permute.xlu0 %1644
      %1647 = vset.pattern.permute.xlu0 1
      %1648 = vperm.xlu0 %1647, %v275
      %v1649 = vpop.permute.xlu0 %1648
      %1651 = vset.pattern.permute.xlu0 1
      %1652 = vperm.xlu0 %1651, %v276
      %v1653 = vpop.permute.xlu0 %1652
      %1655 = vset.pattern.permute.xlu0 1
      %1656 = vperm.xlu0 %1655, %v277
      %v1657 = vpop.permute.xlu0 %1656
      %1659 = vset.pattern.permute.xlu0 1
      %1660 = vperm.xlu0 %1659, %v278
      %v1661 = vpop.permute.xlu0 %1660
      %1663 = vset.pattern.permute.xlu0 1
      %1664 = vperm.xlu0 %1663, %v279
      %v1665 = vpop.permute.xlu0 %1664
      %1667 = vset.pattern.permute.xlu0 1
      %1668 = vperm.xlu0 %1667, %v280
      %v1669 = vpop.permute.xlu0 %1668
      %1671 = vset.pattern.permute.xlu0 1
      %1672 = vperm.xlu0 %1671, %v281
      %v1673 = vpop.permute.xlu0 %1672
      %1675 = vset.pattern.permute.xlu0 1
      %1676 = vperm.xlu0 %1675, %v282
      %v1677 = vpop.permute.xlu0 %1676
      %1679 = vset.pattern.permute.xlu0 1
      %1680 = vperm.xlu0 %1679, %v283
      %v1681 = vpop.permute.xlu0 %1680
      %1683 = vset.pattern.permute.xlu0 1
      %1684 = vperm.xlu0 %1683, %v284
      %v1685 = vpop.permute.xlu0 %1684
      %1687 = vset.pattern.permute.xlu0 1
      %1688 = vperm.xlu0 %1687, %v285
      %v1689 = vpop.permute.xlu0 %1688
      %1691 = vset.pattern.permute.xlu0 1
      %1692 = vperm.xlu0 %1691, %v286
      %v1693 = vpop.permute.xlu0 %1692
      %1695 = vset.pattern.permute.xlu0 1
      %1696 = vperm.xlu0 %1695, %v287
      %v1697 = vpop.permute.xlu0 %1696
      %1699 = vset.pattern.permute.xlu0 1
      %1700 = vperm.xlu0 %1699, %v288
      %v1701 = vpop.permute.xlu0 %1700
      %1703 = vset.pattern.permute.xlu0 1
      %1704 = vperm.xlu0 %1703, %v289
      %v1705 = vpop.permute.xlu0 %1704
      %1707 = vset.pattern.permute.xlu0 1
      %1708 = vperm.xlu0 %1707, %v290
      %v1709 = vpop.permute.xlu0 %1708
      %1711 = vset.pattern.permute.xlu0 1
      %1712 = vperm.xlu0 %1711, %v291
      %v1713 = vpop.permute.xlu0 %1712
      %1715 = vset.pattern.permute.xlu0 1
      %1716 = vperm.xlu0 %1715, %v292
      %v1717 = vpop.permute.xlu0 %1716
      %1719 = vset.pattern.permute.xlu0 1
      %1720 = vperm.xlu0 %1719, %v293
      %v1721 = vpop.permute.xlu0 %1720
      %1723 = vset.pattern.permute.xlu0 1
      %1724 = vperm.xlu0 %1723, %v294
      %v1725 = vpop.permute.xlu0 %1724
      %1727 = vset.pattern.permute.xlu0 1
      %1728 = vperm.xlu0 %1727, %v295
      %v1729 = vpop.permute.xlu0 %1728
      %1731 = vset.pattern.permute.xlu0 1
      %1732 = vperm.xlu0 %1731, %v296
      %v1733 = vpop.permute.xlu0 %1732
      %1735 = vset.pattern.permute.xlu0 1
      %1736 = vperm.xlu0 %1735, %v297
      %v1737 = vpop.permute.xlu0 %1736
      %1739 = vset.pattern.permute.xlu0 1
      %1740 = vperm.xlu0 %1739, %v298
      %v1741 = vpop.permute.xlu0 %1740
      %v1743 = vsel %vm235, %v1617, -inf
      %v1744 = vsel %vm236, %v1621, -inf
      %v1745 = vsel %vm237, %v1625, -inf
      %v1746 = vsel %vm238, %v1629, -inf
      %v1747 = vsel %vm239, %v1633, -inf
      %v1748 = vsel %vm240, %v1637, -inf
      %v1749 = vsel %vm241, %v1641, -inf
      %v1750 = vsel %vm242, %v1645, -inf
      %v1751 = vsel %vm243, %v1649, -inf
      %v1752 = vsel %vm244, %v1653, -inf
      %v1753 = vsel %vm245, %v1657, -inf
      %v1754 = vsel %vm246, %v1661, -inf
      %v1755 = vsel %vm247, %v1665, -inf
      %v1756 = vsel %vm248, %v1669, -inf
      %v1757 = vsel %vm249, %v1673, -inf
      %v1758 = vsel %vm250, %v1677, -inf
      %v1759 = vsel %vm251, %v1681, -inf
      %v1760 = vsel %vm252, %v1685, -inf
      %v1761 = vsel %vm253, %v1689, -inf
      %v1762 = vsel %vm254, %v1693, -inf
      %v1763 = vsel %vm255, %v1697, -inf
      %v1764 = vsel %vm256, %v1701, -inf
      %v1765 = vsel %vm257, %v1705, -inf
      %v1766 = vsel %vm258, %v1709, -inf
      %v1767 = vsel %vm259, %v1713, -inf
      %v1768 = vsel %vm260, %v1717, -inf
      %v1769 = vsel %vm261, %v1721, -inf
      %v1770 = vsel %vm262, %v1725, -inf
      %v1771 = vsel %vm263, %v1729, -inf
      %v1772 = vsel %vm264, %v1733, -inf
      %v1773 = vsel %vm265, %v1737, -inf
      %v1774 = vsel %vm266, %v1741, -inf
      %v1775 = vmax.f32 %v1743, %v1747
      %v1776 = vmax.f32 %v1744, %v1748
      %v1777 = vmax.f32 %v1745, %v1749
      %v1778 = vmax.f32 %v1746, %v1750
      %v1779 = vmax.f32 %v1775, %v1751
      %v1780 = vmax.f32 %v1776, %v1752
      %v1781 = vmax.f32 %v1777, %v1753
      %v1782 = vmax.f32 %v1778, %v1754
      %v1783 = vmax.f32 %v1779, %v1755
      %v1784 = vmax.f32 %v1780, %v1756
      %v1785 = vmax.f32 %v1781, %v1757
      %v1786 = vmax.f32 %v1782, %v1758
      %v1787 = vmax.f32 %v1783, %v1759
      %v1788 = vmax.f32 %v1784, %v1760
      %v1789 = vmax.f32 %v1785, %v1761
      %v1790 = vmax.f32 %v1786, %v1762
      %v1791 = vmax.f32 %v1787, %v1763
      %v1792 = vmax.f32 %v1788, %v1764
      %v1793 = vmax.f32 %v1789, %v1765
      %v1794 = vmax.f32 %v1790, %v1766
      %v1795 = vmax.f32 %v1791, %v1767
      %v1796 = vmax.f32 %v1792, %v1768
      %v1797 = vmax.f32 %v1793, %v1769
      %v1798 = vmax.f32 %v1794, %v1770
      %v1799 = vmax.f32 %v1795, %v1771
      %v1800 = vmax.f32 %v1796, %v1772
      %v1801 = vmax.f32 %v1797, %v1773
      %v1802 = vmax.f32 %v1798, %v1774
      %v1803 = vmax.f32 %v1799, %v1800
      %v1804 = vmax.f32 %v1801, %v1802
      %v1805 = vmax.f32 %v1803, %v1804
      %v1806 = vrot.slane %v1805, 4
      %v1807 = vmax.f32 %v1805, %v1806
      %v1808 = vrot.slane %v1807, 2
      %v1809 = vmax.f32 %v1807, %v1808
      %v1810 = vrot.slane %v1809, 1
      %v1811 = vmax.f32 %v1809, %v1810
      %1812 = vset.pattern.permute.xlu0 2
      %1813 = vperm.xlu0 %1812, %v267
      %v1814 = vpop.permute.xlu0 %1813
      %1816 = vset.pattern.permute.xlu0 2
      %1817 = vperm.xlu0 %1816, %v268
      %v1818 = vpop.permute.xlu0 %1817
      %1820 = vset.pattern.permute.xlu0 2
      %1821 = vperm.xlu0 %1820, %v269
      %v1822 = vpop.permute.xlu0 %1821
      %1824 = vset.pattern.permute.xlu0 2
      %1825 = vperm.xlu0 %1824, %v270
      %v1826 = vpop.permute.xlu0 %1825
      %1828 = vset.pattern.permute.xlu0 2
      %1829 = vperm.xlu0 %1828, %v271
      %v1830 = vpop.permute.xlu0 %1829
      %1832 = vset.pattern.permute.xlu0 2
      %1833 = vperm.xlu0 %1832, %v272
      %v1834 = vpop.permute.xlu0 %1833
      %1836 = vset.pattern.permute.xlu0 2
      %1837 = vperm.xlu0 %1836, %v273
      %v1838 = vpop.permute.xlu0 %1837
      %1840 = vset.pattern.permute.xlu0 2
      %1841 = vperm.xlu0 %1840, %v274
      %v1842 = vpop.permute.xlu0 %1841
      %1844 = vset.pattern.permute.xlu0 2
      %1845 = vperm.xlu0 %1844, %v275
      %v1846 = vpop.permute.xlu0 %1845
      %1848 = vset.pattern.permute.xlu0 2
      %1849 = vperm.xlu0 %1848, %v276
      %v1850 = vpop.permute.xlu0 %1849
      %1852 = vset.pattern.permute.xlu0 2
      %1853 = vperm.xlu0 %1852, %v277
      %v1854 = vpop.permute.xlu0 %1853
      %1856 = vset.pattern.permute.xlu0 2
      %1857 = vperm.xlu0 %1856, %v278
      %v1858 = vpop.permute.xlu0 %1857
      %1860 = vset.pattern.permute.xlu0 2
      %1861 = vperm.xlu0 %1860, %v279
      %v1862 = vpop.permute.xlu0 %1861
      %1864 = vset.pattern.permute.xlu0 2
      %1865 = vperm.xlu0 %1864, %v280
      %v1866 = vpop.permute.xlu0 %1865
      %1868 = vset.pattern.permute.xlu0 2
      %1869 = vperm.xlu0 %1868, %v281
      %v1870 = vpop.permute.xlu0 %1869
      %1872 = vset.pattern.permute.xlu0 2
      %1873 = vperm.xlu0 %1872, %v282
      %v1874 = vpop.permute.xlu0 %1873
      %1876 = vset.pattern.permute.xlu0 2
      %1877 = vperm.xlu0 %1876, %v283
      %v1878 = vpop.permute.xlu0 %1877
      %1880 = vset.pattern.permute.xlu0 2
      %1881 = vperm.xlu0 %1880, %v284
      %v1882 = vpop.permute.xlu0 %1881
      %1884 = vset.pattern.permute.xlu0 2
      %1885 = vperm.xlu0 %1884, %v285
      %v1886 = vpop.permute.xlu0 %1885
      %1888 = vset.pattern.permute.xlu0 2
      %1889 = vperm.xlu0 %1888, %v286
      %v1890 = vpop.permute.xlu0 %1889
      %1892 = vset.pattern.permute.xlu0 2
      %1893 = vperm.xlu0 %1892, %v287
      %v1894 = vpop.permute.xlu0 %1893
      %1896 = vset.pattern.permute.xlu0 2
      %1897 = vperm.xlu0 %1896, %v288
      %v1898 = vpop.permute.xlu0 %1897
      %1900 = vset.pattern.permute.xlu0 2
      %1901 = vperm.xlu0 %1900, %v289
      %v1902 = vpop.permute.xlu0 %1901
      %1904 = vset.pattern.permute.xlu0 2
      %1905 = vperm.xlu0 %1904, %v290
      %v1906 = vpop.permute.xlu0 %1905
      %1908 = vset.pattern.permute.xlu0 2
      %1909 = vperm.xlu0 %1908, %v291
      %v1910 = vpop.permute.xlu0 %1909
      %1912 = vset.pattern.permute.xlu0 2
      %1913 = vperm.xlu0 %1912, %v292
      %v1914 = vpop.permute.xlu0 %1913
      %1916 = vset.pattern.permute.xlu0 2
      %1917 = vperm.xlu0 %1916, %v293
      %v1918 = vpop.permute.xlu0 %1917
      %1920 = vset.pattern.permute.xlu0 2
      %1921 = vperm.xlu0 %1920, %v294
      %v1922 = vpop.permute.xlu0 %1921
      %1924 = vset.pattern.permute.xlu0 2
      %1925 = vperm.xlu0 %1924, %v295
      %v1926 = vpop.permute.xlu0 %1925
      %1928 = vset.pattern.permute.xlu0 2
      %1929 = vperm.xlu0 %1928, %v296
      %v1930 = vpop.permute.xlu0 %1929
      %1932 = vset.pattern.permute.xlu0 2
      %1933 = vperm.xlu0 %1932, %v297
      %v1934 = vpop.permute.xlu0 %1933
      %1936 = vset.pattern.permute.xlu0 2
      %1937 = vperm.xlu0 %1936, %v298
      %v1938 = vpop.permute.xlu0 %1937
      %v1940 = vsel %vm235, %v1814, -inf
      %v1941 = vsel %vm236, %v1818, -inf
      %v1942 = vsel %vm237, %v1822, -inf
      %v1943 = vsel %vm238, %v1826, -inf
      %v1944 = vsel %vm239, %v1830, -inf
      %v1945 = vsel %vm240, %v1834, -inf
      %v1946 = vsel %vm241, %v1838, -inf
      %v1947 = vsel %vm242, %v1842, -inf
      %v1948 = vsel %vm243, %v1846, -inf
      %v1949 = vsel %vm244, %v1850, -inf
      %v1950 = vsel %vm245, %v1854, -inf
      %v1951 = vsel %vm246, %v1858, -inf
      %v1952 = vsel %vm247, %v1862, -inf
      %v1953 = vsel %vm248, %v1866, -inf
      %v1954 = vsel %vm249, %v1870, -inf
      %v1955 = vsel %vm250, %v1874, -inf
      %v1956 = vsel %vm251, %v1878, -inf
      %v1957 = vsel %vm252, %v1882, -inf
      %v1958 = vsel %vm253, %v1886, -inf
      %v1959 = vsel %vm254, %v1890, -inf
      %v1960 = vsel %vm255, %v1894, -inf
      %v1961 = vsel %vm256, %v1898, -inf
      %v1962 = vsel %vm257, %v1902, -inf
      %v1963 = vsel %vm258, %v1906, -inf
      %v1964 = vsel %vm259, %v1910, -inf
      %v1965 = vsel %vm260, %v1914, -inf
      %v1966 = vsel %vm261, %v1918, -inf
      %v1967 = vsel %vm262, %v1922, -inf
      %v1968 = vsel %vm263, %v1926, -inf
      %v1969 = vsel %vm264, %v1930, -inf
      %v1970 = vsel %vm265, %v1934, -inf
      %v1971 = vsel %vm266, %v1938, -inf
      %v1972 = vmax.f32 %v1940, %v1944
      %v1973 = vmax.f32 %v1941, %v1945
      %v1974 = vmax.f32 %v1942, %v1946
      %v1975 = vmax.f32 %v1943, %v1947
      %v1976 = vmax.f32 %v1972, %v1948
      %v1977 = vmax.f32 %v1973, %v1949
      %v1978 = vmax.f32 %v1974, %v1950
      %v1979 = vmax.f32 %v1975, %v1951
      %v1980 = vmax.f32 %v1976, %v1952
      %v1981 = vmax.f32 %v1977, %v1953
      %v1982 = vmax.f32 %v1978, %v1954
      %v1983 = vmax.f32 %v1979, %v1955
      %v1984 = vmax.f32 %v1980, %v1956
      %v1985 = vmax.f32 %v1981, %v1957
      %v1986 = vmax.f32 %v1982, %v1958
      %v1987 = vmax.f32 %v1983, %v1959
      %v1988 = vmax.f32 %v1984, %v1960
      %v1989 = vmax.f32 %v1985, %v1961
      %v1990 = vmax.f32 %v1986, %v1962
      %v1991 = vmax.f32 %v1987, %v1963
      %v1992 = vmax.f32 %v1988, %v1964
      %v1993 = vmax.f32 %v1989, %v1965
      %v1994 = vmax.f32 %v1990, %v1966
      %v1995 = vmax.f32 %v1991, %v1967
      %v1996 = vmax.f32 %v1992, %v1968
      %v1997 = vmax.f32 %v1993, %v1969
      %v1998 = vmax.f32 %v1994, %v1970
      %v1999 = vmax.f32 %v1995, %v1971
      %v2000 = vmax.f32 %v1996, %v1997
      %v2001 = vmax.f32 %v1998, %v1999
      %v2002 = vmax.f32 %v2000, %v2001
      %v2003 = vrot.slane %v2002, 4
      %v2004 = vmax.f32 %v2002, %v2003
      %v2005 = vrot.slane %v2004, 2
      %v2006 = vmax.f32 %v2004, %v2005
      %v2007 = vrot.slane %v2006, 1
      %v2008 = vmax.f32 %v2006, %v2007
      %2009 = vset.pattern.permute.xlu0 3
      %2010 = vperm.xlu0 %2009, %v267
      %v2011 = vpop.permute.xlu0 %2010
      %2013 = vset.pattern.permute.xlu0 3
      %2014 = vperm.xlu0 %2013, %v268
      %v2015 = vpop.permute.xlu0 %2014
      %2017 = vset.pattern.permute.xlu0 3
      %2018 = vperm.xlu0 %2017, %v269
      %v2019 = vpop.permute.xlu0 %2018
      %2021 = vset.pattern.permute.xlu0 3
      %2022 = vperm.xlu0 %2021, %v270
      %v2023 = vpop.permute.xlu0 %2022
      %2025 = vset.pattern.permute.xlu0 3
      %2026 = vperm.xlu0 %2025, %v271
      %v2027 = vpop.permute.xlu0 %2026
      %2029 = vset.pattern.permute.xlu0 3
      %2030 = vperm.xlu0 %2029, %v272
      %v2031 = vpop.permute.xlu0 %2030
      %2033 = vset.pattern.permute.xlu0 3
      %2034 = vperm.xlu0 %2033, %v273
      %v2035 = vpop.permute.xlu0 %2034
      %2037 = vset.pattern.permute.xlu0 3
      %2038 = vperm.xlu0 %2037, %v274
      %v2039 = vpop.permute.xlu0 %2038
      %2041 = vset.pattern.permute.xlu0 3
      %2042 = vperm.xlu0 %2041, %v275
      %v2043 = vpop.permute.xlu0 %2042
      %2045 = vset.pattern.permute.xlu0 3
      %2046 = vperm.xlu0 %2045, %v276
      %v2047 = vpop.permute.xlu0 %2046
      %2049 = vset.pattern.permute.xlu0 3
      %2050 = vperm.xlu0 %2049, %v277
      %v2051 = vpop.permute.xlu0 %2050
      %2053 = vset.pattern.permute.xlu0 3
      %2054 = vperm.xlu0 %2053, %v278
      %v2055 = vpop.permute.xlu0 %2054
      %2057 = vset.pattern.permute.xlu0 3
      %2058 = vperm.xlu0 %2057, %v279
      %v2059 = vpop.permute.xlu0 %2058
      %2061 = vset.pattern.permute.xlu0 3
      %2062 = vperm.xlu0 %2061, %v280
      %v2063 = vpop.permute.xlu0 %2062
      %2065 = vset.pattern.permute.xlu0 3
      %2066 = vperm.xlu0 %2065, %v281
      %v2067 = vpop.permute.xlu0 %2066
      %2069 = vset.pattern.permute.xlu0 3
      %2070 = vperm.xlu0 %2069, %v282
      %v2071 = vpop.permute.xlu0 %2070
      %2073 = vset.pattern.permute.xlu0 3
      %2074 = vperm.xlu0 %2073, %v283
      %v2075 = vpop.permute.xlu0 %2074
      %2077 = vset.pattern.permute.xlu0 3
      %2078 = vperm.xlu0 %2077, %v284
      %v2079 = vpop.permute.xlu0 %2078
      %2081 = vset.pattern.permute.xlu0 3
      %2082 = vperm.xlu0 %2081, %v285
      %v2083 = vpop.permute.xlu0 %2082
      %2085 = vset.pattern.permute.xlu0 3
      %2086 = vperm.xlu0 %2085, %v286
      %v2087 = vpop.permute.xlu0 %2086
      %2089 = vset.pattern.permute.xlu0 3
      %2090 = vperm.xlu0 %2089, %v287
      %v2091 = vpop.permute.xlu0 %2090
      %2093 = vset.pattern.permute.xlu0 3
      %2094 = vperm.xlu0 %2093, %v288
      %v2095 = vpop.permute.xlu0 %2094
      %2097 = vset.pattern.permute.xlu0 3
      %2098 = vperm.xlu0 %2097, %v289
      %v2099 = vpop.permute.xlu0 %2098
      %2101 = vset.pattern.permute.xlu0 3
      %2102 = vperm.xlu0 %2101, %v290
      %v2103 = vpop.permute.xlu0 %2102
      %2105 = vset.pattern.permute.xlu0 3
      %2106 = vperm.xlu0 %2105, %v291
      %v2107 = vpop.permute.xlu0 %2106
      %2109 = vset.pattern.permute.xlu0 3
      %2110 = vperm.xlu0 %2109, %v292
      %v2111 = vpop.permute.xlu0 %2110
      %2113 = vset.pattern.permute.xlu0 3
      %2114 = vperm.xlu0 %2113, %v293
      %v2115 = vpop.permute.xlu0 %2114
      %2117 = vset.pattern.permute.xlu0 3
      %2118 = vperm.xlu0 %2117, %v294
      %v2119 = vpop.permute.xlu0 %2118
      %2121 = vset.pattern.permute.xlu0 3
      %2122 = vperm.xlu0 %2121, %v295
      %v2123 = vpop.permute.xlu0 %2122
      %2125 = vset.pattern.permute.xlu0 3
      %2126 = vperm.xlu0 %2125, %v296
      %v2127 = vpop.permute.xlu0 %2126
      %2129 = vset.pattern.permute.xlu0 3
      %2130 = vperm.xlu0 %2129, %v297
      %v2131 = vpop.permute.xlu0 %2130
      %2133 = vset.pattern.permute.xlu0 3
      %2134 = vperm.xlu0 %2133, %v298
      %v2135 = vpop.permute.xlu0 %2134
      %v2137 = vsel %vm235, %v2011, -inf
      %v2138 = vsel %vm236, %v2015, -inf
      %v2139 = vsel %vm237, %v2019, -inf
      %v2140 = vsel %vm238, %v2023, -inf
      %v2141 = vsel %vm239, %v2027, -inf
      %v2142 = vsel %vm240, %v2031, -inf
      %v2143 = vsel %vm241, %v2035, -inf
      %v2144 = vsel %vm242, %v2039, -inf
      %v2145 = vsel %vm243, %v2043, -inf
      %v2146 = vsel %vm244, %v2047, -inf
      %v2147 = vsel %vm245, %v2051, -inf
      %v2148 = vsel %vm246, %v2055, -inf
      %v2149 = vsel %vm247, %v2059, -inf
      %v2150 = vsel %vm248, %v2063, -inf
      %v2151 = vsel %vm249, %v2067, -inf
      %v2152 = vsel %vm250, %v2071, -inf
      %v2153 = vsel %vm251, %v2075, -inf
      %v2154 = vsel %vm252, %v2079, -inf
      %v2155 = vsel %vm253, %v2083, -inf
      %v2156 = vsel %vm254, %v2087, -inf
      %v2157 = vsel %vm255, %v2091, -inf
      %v2158 = vsel %vm256, %v2095, -inf
      %v2159 = vsel %vm257, %v2099, -inf
      %v2160 = vsel %vm258, %v2103, -inf
      %v2161 = vsel %vm259, %v2107, -inf
      %v2162 = vsel %vm260, %v2111, -inf
      %v2163 = vsel %vm261, %v2115, -inf
      %v2164 = vsel %vm262, %v2119, -inf
      %v2165 = vsel %vm263, %v2123, -inf
      %v2166 = vsel %vm264, %v2127, -inf
      %v2167 = vsel %vm265, %v2131, -inf
      %v2168 = vsel %vm266, %v2135, -inf
      %v2169 = vmax.f32 %v2137, %v2141
      %v2170 = vmax.f32 %v2138, %v2142
      %v2171 = vmax.f32 %v2139, %v2143
      %v2172 = vmax.f32 %v2140, %v2144
      %v2173 = vmax.f32 %v2169, %v2145
      %v2174 = vmax.f32 %v2170, %v2146
      %v2175 = vmax.f32 %v2171, %v2147
      %v2176 = vmax.f32 %v2172, %v2148
      %v2177 = vmax.f32 %v2173, %v2149
      %v2178 = vmax.f32 %v2174, %v2150
      %v2179 = vmax.f32 %v2175, %v2151
      %v2180 = vmax.f32 %v2176, %v2152
      %v2181 = vmax.f32 %v2177, %v2153
      %v2182 = vmax.f32 %v2178, %v2154
      %v2183 = vmax.f32 %v2179, %v2155
      %v2184 = vmax.f32 %v2180, %v2156
      %v2185 = vmax.f32 %v2181, %v2157
      %v2186 = vmax.f32 %v2182, %v2158
      %v2187 = vmax.f32 %v2183, %v2159
      %v2188 = vmax.f32 %v2184, %v2160
      %v2189 = vmax.f32 %v2185, %v2161
      %v2190 = vmax.f32 %v2186, %v2162
      %v2191 = vmax.f32 %v2187, %v2163
      %v2192 = vmax.f32 %v2188, %v2164
      %v2193 = vmax.f32 %v2189, %v2165
      %v2194 = vmax.f32 %v2190, %v2166
      %v2195 = vmax.f32 %v2191, %v2167
      %v2196 = vmax.f32 %v2192, %v2168
      %v2197 = vmax.f32 %v2193, %v2194
      %v2198 = vmax.f32 %v2195, %v2196
      %v2199 = vmax.f32 %v2197, %v2198
      %v2200 = vrot.slane %v2199, 4
      %v2201 = vmax.f32 %v2199, %v2200
      %v2202 = vrot.slane %v2201, 2
      %v2203 = vmax.f32 %v2201, %v2202
      %v2204 = vrot.slane %v2203, 1
      %v2205 = vmax.f32 %v2203, %v2204
      %vm2206 = vcmask 1040384
      %v2207 = vsel %vm2206, %v1614, %v1811
      %vm2208 = vcmask 1041408
      %v2209 = vsel %vm2208, %v2207, %v2008
      %vm2210 = vcmask 1042432
      %v2211 = vsel %vm2210, %v2209, %v2205
      %v2212 = vmax.f32 %v299, %v2211
      %v2214 = vrot.slane %v1415, 4
      %v2216 = vadd.f32 %v299, %v2214
      %vm2217 = vcmask 1043456
      %v2218 = vsel %vm2217, %v2212, %v2216
      %2219 = vst [vmem:[#allocation5] sm:$0xff] %v2218
    $region17: #{tpu_custom_call.1} parent=1 // pred_fallthru
      _
    // Predicated region
    $region18: #{tpu_custom_call.1} parent=1 // pred_check
      %p2220 = pneg %p90
    $region19: #{tpu_custom_call.1} parent=1 // pred_check_branch
      %2222 = sbr.rel (%p2220) target = $region21
    $region20: #{tpu_custom_call.1} parent=1 // pred_region
      %v2223 = vld [vmem:[#allocation5] sm:$0xff]
      %v2224 = vmax.f32 %v2223, 1.0
      %v2225 = vlaneseq
      %v2226 = vshrl.u32 %v2225, 7
      %v2227 = vsub.s32 7, %v2226
      %v2228 = vrot.slane %v2224, %v2227
      %v2229 = vrcp.pop %v2228
      %v2230 = vmul.f32 %v2223, %v2229
      %vm2231 = vcmask 1043456
      %v2232 = vsel %vm2231, %v2223, %v2230
      %vm2233 = vcmask 1046528
      %v2234 = vsel %vm2233, %v2232, %v2223
      %2235 = vst [vmem:[#allocation5] sm:$0xff] %v2234
    $region21: #{tpu_custom_call.1} parent=1 // pred_fallthru
      _
    // Predicated region
    $region22: #{tpu_custom_call.1} parent=1 // pred_check
      _
    $region23: #{tpu_custom_call.1} parent=1 // pred_check_branch
      %2237 = sbr.rel (0) target = $region25
    $region24: #{tpu_custom_call.1} parent=1 // pred_region
      %s2239 = ssub.s32 128, 128
      %2240 = vsyncadd [#allocation6], %s2239
      %s2242 = sshll.u32 [#allocation5], 4
      %s2243 = int_to_ptr.vmem [resolvable:$true] %s2242
      %2245 = dma.vmem_to_hbm [thread:$0]  %s2243, 128, %s4, [#allocation6]
    $region25: #{tpu_custom_call.1} parent=1 // pred_fallthru
      _
    // Predicated region
    $region26: #{tpu_custom_call.1} parent=1 // pred_check
      _
    $region27: #{tpu_custom_call.1} parent=1 // pred_check_branch
      %2247 = sbr.rel (0) target = $region29
    $region28: #{tpu_custom_call.1} parent=1 // pred_region
      %2248 = dma.done [#allocation6], 128
    $region29: #{tpu_custom_call.1} parent=1 // pred_fallthru
      _
    %2249 = vsyncpa [#allocation6], 1

</llo_original>
